<compile_context>
chip_gen: v7x
topology: tpu7x:2x2x1
jax: 0.10.0
libtpu: 0.0.40
codegen_flags: <defaults>
</compile_context>

<pallas_src>
import functools

import jax
import jax.numpy as jnp
from jax import lax
from jax.experimental import pallas as pl
from jax.experimental.pallas import tpu as pltpu


def _round_up(x, m):
    return (x + m - 1) // m * m


def domdep_kernel(ids_ref,                     # SMEM [B_pad*S] int32 (scalar prefetch)
                  emb_ref,                     # [V_pad, E_pad] f32
                  w1_ref, b1_ref,              # [E_pad, H_pad] bf16, [1, H_pad] f32
                  wg_ref, bg_ref,              # [H_pad, G_pad] bf16, [1, G_pad] f32
                  w2_ref, b2_ref,              # [H_pad, O_pad] bf16, [1, O_pad] f32
                  out_ref,                     # [Bt, O_pad] f32
                  xmean_ref,                   # VMEM scratch [Bt, E_pad] f32
                  *, bt, seq, n_blocks, block_size, inv_seq):
    bi = pl.program_id(0)
    base = bi * (bt * seq)

    # ---- embedding gather + mean over sequence (f32 accumulation) ----------
    # bt and seq are small and static: fully unrolled; only the token row
    # index into the embedding table is dynamic (a [1, E_pad] vector load).
    for r in range(bt):
        acc = jnp.zeros((1, emb_ref.shape[1]), jnp.float32)
        for s in range(seq):
            tok = ids_ref[base + r * seq + s]
            acc = acc + emb_ref[pl.ds(tok, 1), :]
        xmean_ref[pl.ds(r, 1), :] = acc * inv_seq

    xmean = xmean_ref[...]                                        # [Bt, E_pad] f32

    # ---- ff1 + relu (bf16 MXU, f32 accumulation) ----------------------------
    h = jnp.dot(xmean.astype(jnp.bfloat16), w1_ref[...],
                preferred_element_type=jnp.float32) + b1_ref[...]
    h = jnp.maximum(h, 0.0)                                       # [Bt, H_pad] f32

    # ---- mod-factor generator + masked softmax over the real block lanes ----
    logits = jnp.dot(h.astype(jnp.bfloat16), wg_ref[...],
                     preferred_element_type=jnp.float32) + bg_ref[...]
    lane = lax.broadcasted_iota(jnp.int32, logits.shape, 1)
    logits = jnp.where(lane < n_blocks, logits, -1e30)            # mask padded lanes
    m = jnp.max(logits, axis=1, keepdims=True)
    e = jnp.exp(logits - m)
    p = e * pl.reciprocal(jnp.sum(e, axis=1, keepdims=True), approx=True)

    # ---- repeat_interleave(block_size) via in-kernel 0/1 expand matrix ------
    g_pad, h_pad = logits.shape[1], h.shape[1]
    g_iota = lax.broadcasted_iota(jnp.int32, (g_pad, h_pad), 0)
    h_iota = lax.broadcasted_iota(jnp.int32, (g_pad, h_pad), 1)
    lo = g_iota * block_size
    expand = jnp.where((h_iota >= lo) & (h_iota < lo + block_size),
                       1.0, 0.0).astype(jnp.bfloat16)
    mod = jnp.dot(p.astype(jnp.bfloat16), expand,
                  preferred_element_type=jnp.float32)             # [Bt, H_pad] f32

    # ---- modulate + ff2 ------------------------------------------------------
    hmod = (h * mod).astype(jnp.bfloat16)
    out_ref[...] = (jnp.dot(hmod, w2_ref[...],
                            preferred_element_type=jnp.float32) + b2_ref[...])


def domdep_forward(x_tokens, params, *, vocab_size, hidden_size, output_size,
                   blocks, embedding_dim, batch_tile=8):
    assert hidden_size % blocks == 0
    B, S = x_tokens.shape
    block_size = hidden_size // blocks
    emb, w1, b1, wg, bg, w2, b2 = params

    # Padded sizes: features to 128 lanes, batch/vocab rows to 8 sublanes.
    E_pad = _round_up(embedding_dim, 128)
    H_pad = _round_up(hidden_size, 128)
    G_pad = _round_up(blocks, 128)
    O_pad = _round_up(output_size, 128)
    V_pad = _round_up(vocab_size + 1, 8)
    Bt = _round_up(batch_tile, 8)
    B_pad = _round_up(B, Bt)

    # Zero-pad params; matmul weights in bf16 (f32 accumulation in-kernel).
    emb_p = jnp.zeros((V_pad, E_pad), jnp.float32
                      ).at[:vocab_size + 1, :embedding_dim].set(emb)
    w1_p = jnp.zeros((E_pad, H_pad), jnp.float32
                     ).at[:embedding_dim, :hidden_size].set(w1).astype(jnp.bfloat16)
    wg_p = jnp.zeros((H_pad, G_pad), jnp.float32
                     ).at[:hidden_size, :blocks].set(wg).astype(jnp.bfloat16)
    w2_p = jnp.zeros((H_pad, O_pad), jnp.float32
                     ).at[:hidden_size, :output_size].set(w2).astype(jnp.bfloat16)
    b1_p = jnp.zeros((1, H_pad), jnp.float32).at[0, :hidden_size].set(b1)
    bg_p = jnp.zeros((1, G_pad), jnp.float32).at[0, :blocks].set(bg)
    b2_p = jnp.zeros((1, O_pad), jnp.float32).at[0, :output_size].set(b2)

    # Token ids: pad batch, flatten to 1D (compact SMEM scalar prefetch).
    ids = jnp.zeros((B_pad, S), jnp.int32).at[:B, :].set(x_tokens).reshape(-1)

    kernel = functools.partial(domdep_kernel, bt=Bt, seq=S, n_blocks=blocks,
                               block_size=block_size, inv_seq=1.0 / S)

    flops = 2 * B_pad * (S * E_pad + E_pad * H_pad + H_pad * G_pad
                         + G_pad * H_pad + H_pad * O_pad)
    transcendentals = B_pad * (G_pad + 1)
    bytes_accessed = (emb_p.size * 4 + ids.size * 4
                      + (w1_p.size + wg_p.size + w2_p.size) * 2
                      + (b1_p.size + bg_p.size + b2_p.size) * 4
                      + B_pad * O_pad * 4)

    resident = lambda i, ids_ref: (0, 0)   # weights: same block every grid step
    grid_spec = pltpu.PrefetchScalarGridSpec(
        num_scalar_prefetch=1,
        grid=(B_pad // Bt,),
        in_specs=[
            pl.BlockSpec((V_pad, E_pad), resident),   # embedding table
            pl.BlockSpec((E_pad, H_pad), resident),   # w1
            pl.BlockSpec((1, H_pad), resident),       # b1
            pl.BlockSpec((H_pad, G_pad), resident),   # wg
            pl.BlockSpec((1, G_pad), resident),       # bg
            pl.BlockSpec((H_pad, O_pad), resident),   # w2
            pl.BlockSpec((1, O_pad), resident),       # b2
        ],
        out_specs=pl.BlockSpec((Bt, O_pad), lambda i, ids_ref: (i, 0)),
        scratch_shapes=[pltpu.VMEM((Bt, E_pad), jnp.float32)],
    )

    out_pad = pl.pallas_call(
        kernel,
        out_shape=jax.ShapeDtypeStruct((B_pad, O_pad), jnp.float32),
        grid_spec=grid_spec,
        compiler_params=pltpu.CompilerParams(
            dimension_semantics=("parallel",),
            vmem_limit_bytes=32 * 1024 * 1024),
        cost_estimate=pl.CostEstimate(flops=int(flops),
                                      transcendentals=int(transcendentals),
                                      bytes_accessed=int(bytes_accessed)),
    )(ids, emb_p, w1_p, b1_p, wg_p, bg_p, w2_p, b2_p)

    return out_pad[:B, :output_size]


# --------------------------- references (for self-check) ---------------------

def reference_forward(x_tokens, params, *, hidden_size, blocks, **_):
    """Pure f32 reference matching the PyTorch module semantics."""
    emb, w1, b1, wg, bg, w2, b2 = params
    bs = hidden_size // blocks
    xm = emb[x_tokens].mean(axis=1)
    h = jax.nn.relu(xm @ w1 + b1)
    p = jax.nn.softmax(h @ wg + bg, axis=1)
    mod = jnp.repeat(p, bs, axis=1)[:, :hidden_size]
    return (h * mod) @ w2 + b2


def matched_reference(x_tokens, params, *, hidden_size, blocks, **_):
    """Reference with the same bf16 matmul-operand casts the kernel uses."""
    emb, w1, b1, wg, bg, w2, b2 = params
    bs = hidden_size // blocks
    bf = jnp.bfloat16
    xm = emb[x_tokens].mean(axis=1)
    h = jnp.maximum(jnp.dot(xm.astype(bf), w1.astype(bf),
                            preferred_element_type=jnp.float32) + b1, 0.0)
    logits = jnp.dot(h.astype(bf), wg.astype(bf),
                     preferred_element_type=jnp.float32) + bg
    p = jax.nn.softmax(logits, axis=1)
    mod = jnp.repeat(p, bs, axis=1)[:, :hidden_size]
    hmod = (h * mod).astype(bf)
    return jnp.dot(hmod, w2.astype(bf), preferred_element_type=jnp.float32) + b2


if __name__ == "__main__":
    vocab_size = 16
    embedding_dim = 32
    hidden_size = 32
    output_size = 8
    blocks = 4
    B, S = 2, 8
    assert hidden_size % blocks == 0

    key = jax.random.PRNGKey(0)
    k_emb, k_w1, k_b1, k_wg, k_bg, k_w2, k_b2, k_x = jax.random.split(key, 8)

    # Linear weights stored transposed vs. PyTorch: [in, out], y = x @ W + b.
    emb = jax.random.normal(k_emb, (vocab_size + 1, embedding_dim), jnp.float32)
    w1 = jax.random.normal(k_w1, (embedding_dim, hidden_size), jnp.float32) * 0.5
    b1 = jax.random.normal(k_b1, (hidden_size,), jnp.float32) * 0.1
    wg = jax.random.normal(k_wg, (hidden_size, blocks), jnp.float32) * 0.5
    bg = jax.random.normal(k_bg, (blocks,), jnp.float32) * 0.1
    w2 = jax.random.normal(k_w2, (hidden_size, output_size), jnp.float32) * 0.5
    b2 = jax.random.normal(k_b2, (output_size,), jnp.float32) * 0.1
    params = (emb, w1, b1, wg, bg, w2, b2)

    x = jax.random.randint(k_x, (B, S), 0, vocab_size + 1, dtype=jnp.int32)

    cfg = dict(vocab_size=vocab_size, hidden_size=hidden_size,
               output_size=output_size, blocks=blocks, embedding_dim=embedding_dim)

    out = jax.block_until_ready(domdep_forward(x, params, **cfg))
    assert out.shape == (B, output_size)

    ref_bf = matched_reference(x, params, **cfg)   # tight check (same dtypes)
    ref_f32 = reference_forward(x, params, **cfg)  # semantic check (bf16 noise)

    assert jnp.allclose(out, ref_bf, atol=1e-2, rtol=2e-2), (out, ref_bf)
    assert jnp.allclose(out, ref_f32, atol=1e-1, rtol=5e-2), (out, ref_f32)
    print("KERNEL_OK")
</pallas_src>

<mosaic_0001>
module attributes {stable_mosaic.version = 11 : i64} {
  func.func @domdep_kernel(%arg0: i32, %arg1: memref<64xi32, #tpu.memory_space<smem>>, %arg2: memref<24x128xf32, #tpu.memory_space<vmem>>, %arg3: memref<128x128xbf16, #tpu.memory_space<vmem>>, %arg4: memref<1x128xf32, #tpu.memory_space<vmem>>, %arg5: memref<128x128xbf16, #tpu.memory_space<vmem>>, %arg6: memref<1x128xf32, #tpu.memory_space<vmem>>, %arg7: memref<128x128xbf16, #tpu.memory_space<vmem>>, %arg8: memref<1x128xf32, #tpu.memory_space<vmem>>, %arg9: memref<8x128xf32, #tpu.memory_space<vmem>>, %arg10: memref<8x128xf32, #tpu.memory_space<vmem>>) attributes {dimension_semantics = [#tpu.dimension_semantics<parallel>], iteration_bounds = array<i64: 1>, scalar_prefetch = 1 : i64, scratch_operands = 1 : i64, tpu.core_type = #tpu.core_type<tc>, window_params = [{pipeline_mode = #tpu.pipeline_mode<synchronous>, transform_indices = @transform_0, window_bounds = array<i64: 24, 128>}, {pipeline_mode = #tpu.pipeline_mode<synchronous>, transform_indices = @transform_1, window_bounds = array<i64: 128, 128>}, {pipeline_mode = #tpu.pipeline_mode<synchronous>, transform_indices = @transform_2, window_bounds = array<i64: 1, 128>}, {pipeline_mode = #tpu.pipeline_mode<synchronous>, transform_indices = @transform_3, window_bounds = array<i64: 128, 128>}, {pipeline_mode = #tpu.pipeline_mode<synchronous>, transform_indices = @transform_4, window_bounds = array<i64: 1, 128>}, {pipeline_mode = #tpu.pipeline_mode<synchronous>, transform_indices = @transform_5, window_bounds = array<i64: 128, 128>}, {pipeline_mode = #tpu.pipeline_mode<synchronous>, transform_indices = @transform_6, window_bounds = array<i64: 1, 128>}, {transform_indices = @transform_7, window_bounds = array<i64: 8, 128>}]} {
    %c64_i32 = arith.constant 64 : i32
    %0 = arith.muli %arg0, %c64_i32 : i32
    %cst = arith.constant 0.000000e+00 : f32
    %1 = vector.broadcast %cst : f32 to vector<1x128xf32>
    %c0_i32 = arith.constant 0 : i32
    %2 = arith.addi %0, %c0_i32 : i32
    %c0_i32_0 = arith.constant 0 : i32
    %3 = arith.addi %2, %c0_i32_0 : i32
    %4 = arith.index_cast %3 : i32 to index
    %5 = memref.load %arg1[%4] : memref<64xi32, #tpu.memory_space<smem>>
    %6 = arith.index_cast %5 : i32 to index
    %c0 = arith.constant 0 : index
    %7 = vector.load %arg2[%6, %c0] : memref<24x128xf32, #tpu.memory_space<vmem>>, vector<1x128xf32>
    %8 = arith.addf %1, %7 : vector<1x128xf32>
    %c0_i32_1 = arith.constant 0 : i32
    %9 = arith.addi %0, %c0_i32_1 : i32
    %c1_i32 = arith.constant 1 : i32
    %10 = arith.addi %9, %c1_i32 : i32
    %11 = arith.index_cast %10 : i32 to index
    %12 = memref.load %arg1[%11] : memref<64xi32, #tpu.memory_space<smem>>
    %13 = arith.index_cast %12 : i32 to index
    %c0_2 = arith.constant 0 : index
    %14 = vector.load %arg2[%13, %c0_2] : memref<24x128xf32, #tpu.memory_space<vmem>>, vector<1x128xf32>
    %15 = arith.addf %8, %14 : vector<1x128xf32>
    %c0_i32_3 = arith.constant 0 : i32
    %16 = arith.addi %0, %c0_i32_3 : i32
    %c2_i32 = arith.constant 2 : i32
    %17 = arith.addi %16, %c2_i32 : i32
    %18 = arith.index_cast %17 : i32 to index
    %19 = memref.load %arg1[%18] : memref<64xi32, #tpu.memory_space<smem>>
    %20 = arith.index_cast %19 : i32 to index
    %c0_4 = arith.constant 0 : index
    %21 = vector.load %arg2[%20, %c0_4] : memref<24x128xf32, #tpu.memory_space<vmem>>, vector<1x128xf32>
    %22 = arith.addf %15, %21 : vector<1x128xf32>
    %c0_i32_5 = arith.constant 0 : i32
    %23 = arith.addi %0, %c0_i32_5 : i32
    %c3_i32 = arith.constant 3 : i32
    %24 = arith.addi %23, %c3_i32 : i32
    %25 = arith.index_cast %24 : i32 to index
    %26 = memref.load %arg1[%25] : memref<64xi32, #tpu.memory_space<smem>>
    %27 = arith.index_cast %26 : i32 to index
    %c0_6 = arith.constant 0 : index
    %28 = vector.load %arg2[%27, %c0_6] : memref<24x128xf32, #tpu.memory_space<vmem>>, vector<1x128xf32>
    %29 = arith.addf %22, %28 : vector<1x128xf32>
    %c0_i32_7 = arith.constant 0 : i32
    %30 = arith.addi %0, %c0_i32_7 : i32
    %c4_i32 = arith.constant 4 : i32
    %31 = arith.addi %30, %c4_i32 : i32
    %32 = arith.index_cast %31 : i32 to index
    %33 = memref.load %arg1[%32] : memref<64xi32, #tpu.memory_space<smem>>
    %34 = arith.index_cast %33 : i32 to index
    %c0_8 = arith.constant 0 : index
    %35 = vector.load %arg2[%34, %c0_8] : memref<24x128xf32, #tpu.memory_space<vmem>>, vector<1x128xf32>
    %36 = arith.addf %29, %35 : vector<1x128xf32>
    %c0_i32_9 = arith.constant 0 : i32
    %37 = arith.addi %0, %c0_i32_9 : i32
    %c5_i32 = arith.constant 5 : i32
    %38 = arith.addi %37, %c5_i32 : i32
    %39 = arith.index_cast %38 : i32 to index
    %40 = memref.load %arg1[%39] : memref<64xi32, #tpu.memory_space<smem>>
    %41 = arith.index_cast %40 : i32 to index
    %c0_10 = arith.constant 0 : index
    %42 = vector.load %arg2[%41, %c0_10] : memref<24x128xf32, #tpu.memory_space<vmem>>, vector<1x128xf32>
    %43 = arith.addf %36, %42 : vector<1x128xf32>
    %c0_i32_11 = arith.constant 0 : i32
    %44 = arith.addi %0, %c0_i32_11 : i32
    %c6_i32 = arith.constant 6 : i32
    %45 = arith.addi %44, %c6_i32 : i32
    %46 = arith.index_cast %45 : i32 to index
    %47 = memref.load %arg1[%46] : memref<64xi32, #tpu.memory_space<smem>>
    %48 = arith.index_cast %47 : i32 to index
    %c0_12 = arith.constant 0 : index
    %49 = vector.load %arg2[%48, %c0_12] : memref<24x128xf32, #tpu.memory_space<vmem>>, vector<1x128xf32>
    %50 = arith.addf %43, %49 : vector<1x128xf32>
    %c0_i32_13 = arith.constant 0 : i32
    %51 = arith.addi %0, %c0_i32_13 : i32
    %c7_i32 = arith.constant 7 : i32
    %52 = arith.addi %51, %c7_i32 : i32
    %53 = arith.index_cast %52 : i32 to index
    %54 = memref.load %arg1[%53] : memref<64xi32, #tpu.memory_space<smem>>
    %55 = arith.index_cast %54 : i32 to index
    %c0_14 = arith.constant 0 : index
    %56 = vector.load %arg2[%55, %c0_14] : memref<24x128xf32, #tpu.memory_space<vmem>>, vector<1x128xf32>
    %57 = arith.addf %50, %56 : vector<1x128xf32>
    %cst_15 = arith.constant 1.250000e-01 : f32
    %58 = vector.broadcast %cst_15 : f32 to vector<1x128xf32>
    %59 = arith.mulf %57, %58 : vector<1x128xf32>
    %c0_16 = arith.constant 0 : index
    %c0_17 = arith.constant 0 : index
    %60 = vector.load %arg10[%c0_16, %c0_17] : memref<8x128xf32, #tpu.memory_space<vmem>>, vector<1x128xf32>
    tpu.vector_store %arg10[%c0_16, %c0_17], %59 {strides = array<i32>} : memref<8x128xf32, #tpu.memory_space<vmem>>, vector<1x128xf32>,
    %cst_18 = arith.constant 0.000000e+00 : f32
    %61 = vector.broadcast %cst_18 : f32 to vector<1x128xf32>
    %c8_i32 = arith.constant 8 : i32
    %62 = arith.addi %0, %c8_i32 : i32
    %c0_i32_19 = arith.constant 0 : i32
    %63 = arith.addi %62, %c0_i32_19 : i32
    %64 = arith.index_cast %63 : i32 to index
    %65 = memref.load %arg1[%64] : memref<64xi32, #tpu.memory_space<smem>>
    %66 = arith.index_cast %65 : i32 to index
    %c0_20 = arith.constant 0 : index
    %67 = vector.load %arg2[%66, %c0_20] : memref<24x128xf32, #tpu.memory_space<vmem>>, vector<1x128xf32>
    %68 = arith.addf %61, %67 : vector<1x128xf32>
    %c8_i32_21 = arith.constant 8 : i32
    %69 = arith.addi %0, %c8_i32_21 : i32
    %c1_i32_22 = arith.constant 1 : i32
    %70 = arith.addi %69, %c1_i32_22 : i32
    %71 = arith.index_cast %70 : i32 to index
    %72 = memref.load %arg1[%71] : memref<64xi32, #tpu.memory_space<smem>>
    %73 = arith.index_cast %72 : i32 to index
    %c0_23 = arith.constant 0 : index
    %74 = vector.load %arg2[%73, %c0_23] : memref<24x128xf32, #tpu.memory_space<vmem>>, vector<1x128xf32>
    %75 = arith.addf %68, %74 : vector<1x128xf32>
    %c8_i32_24 = arith.constant 8 : i32
    %76 = arith.addi %0, %c8_i32_24 : i32
    %c2_i32_25 = arith.constant 2 : i32
    %77 = arith.addi %76, %c2_i32_25 : i32
    %78 = arith.index_cast %77 : i32 to index
    %79 = memref.load %arg1[%78] : memref<64xi32, #tpu.memory_space<smem>>
    %80 = arith.index_cast %79 : i32 to index
    %c0_26 = arith.constant 0 : index
    %81 = vector.load %arg2[%80, %c0_26] : memref<24x128xf32, #tpu.memory_space<vmem>>, vector<1x128xf32>
    %82 = arith.addf %75, %81 : vector<1x128xf32>
    %c8_i32_27 = arith.constant 8 : i32
    %83 = arith.addi %0, %c8_i32_27 : i32
    %c3_i32_28 = arith.constant 3 : i32
    %84 = arith.addi %83, %c3_i32_28 : i32
    %85 = arith.index_cast %84 : i32 to index
    %86 = memref.load %arg1[%85] : memref<64xi32, #tpu.memory_space<smem>>
    %87 = arith.index_cast %86 : i32 to index
    %c0_29 = arith.constant 0 : index
    %88 = vector.load %arg2[%87, %c0_29] : memref<24x128xf32, #tpu.memory_space<vmem>>, vector<1x128xf32>
    %89 = arith.addf %82, %88 : vector<1x128xf32>
    %c8_i32_30 = arith.constant 8 : i32
    %90 = arith.addi %0, %c8_i32_30 : i32
    %c4_i32_31 = arith.constant 4 : i32
    %91 = arith.addi %90, %c4_i32_31 : i32
    %92 = arith.index_cast %91 : i32 to index
    %93 = memref.load %arg1[%92] : memref<64xi32, #tpu.memory_space<smem>>
    %94 = arith.index_cast %93 : i32 to index
    %c0_32 = arith.constant 0 : index
    %95 = vector.load %arg2[%94, %c0_32] : memref<24x128xf32, #tpu.memory_space<vmem>>, vector<1x128xf32>
    %96 = arith.addf %89, %95 : vector<1x128xf32>
    %c8_i32_33 = arith.constant 8 : i32
    %97 = arith.addi %0, %c8_i32_33 : i32
    %c5_i32_34 = arith.constant 5 : i32
    %98 = arith.addi %97, %c5_i32_34 : i32
    %99 = arith.index_cast %98 : i32 to index
    %100 = memref.load %arg1[%99] : memref<64xi32, #tpu.memory_space<smem>>
    %101 = arith.index_cast %100 : i32 to index
    %c0_35 = arith.constant 0 : index
    %102 = vector.load %arg2[%101, %c0_35] : memref<24x128xf32, #tpu.memory_space<vmem>>, vector<1x128xf32>
    %103 = arith.addf %96, %102 : vector<1x128xf32>
    %c8_i32_36 = arith.constant 8 : i32
    %104 = arith.addi %0, %c8_i32_36 : i32
    %c6_i32_37 = arith.constant 6 : i32
    %105 = arith.addi %104, %c6_i32_37 : i32
    %106 = arith.index_cast %105 : i32 to index
    %107 = memref.load %arg1[%106] : memref<64xi32, #tpu.memory_space<smem>>
    %108 = arith.index_cast %107 : i32 to index
    %c0_38 = arith.constant 0 : index
    %109 = vector.load %arg2[%108, %c0_38] : memref<24x128xf32, #tpu.memory_space<vmem>>, vector<1x128xf32>
    %110 = arith.addf %103, %109 : vector<1x128xf32>
    %c8_i32_39 = arith.constant 8 : i32
    %111 = arith.addi %0, %c8_i32_39 : i32
    %c7_i32_40 = arith.constant 7 : i32
    %112 = arith.addi %111, %c7_i32_40 : i32
    %113 = arith.index_cast %112 : i32 to index
    %114 = memref.load %arg1[%113] : memref<64xi32, #tpu.memory_space<smem>>
    %115 = arith.index_cast %114 : i32 to index
    %c0_41 = arith.constant 0 : index
    %116 = vector.load %arg2[%115, %c0_41] : memref<24x128xf32, #tpu.memory_space<vmem>>, vector<1x128xf32>
    %117 = arith.addf %110, %116 : vector<1x128xf32>
    %cst_42 = arith.constant 1.250000e-01 : f32
    %118 = vector.broadcast %cst_42 : f32 to vector<1x128xf32>
    %119 = arith.mulf %117, %118 : vector<1x128xf32>
    %c1 = arith.constant 1 : index
    %c0_43 = arith.constant 0 : index
    %120 = vector.load %arg10[%c1, %c0_43] : memref<8x128xf32, #tpu.memory_space<vmem>>, vector<1x128xf32>
    tpu.vector_store %arg10[%c1, %c0_43], %119 {strides = array<i32>} : memref<8x128xf32, #tpu.memory_space<vmem>>, vector<1x128xf32>,
    %cst_44 = arith.constant 0.000000e+00 : f32
    %121 = vector.broadcast %cst_44 : f32 to vector<1x128xf32>
    %c16_i32 = arith.constant 16 : i32
    %122 = arith.addi %0, %c16_i32 : i32
    %c0_i32_45 = arith.constant 0 : i32
    %123 = arith.addi %122, %c0_i32_45 : i32
    %124 = arith.index_cast %123 : i32 to index
    %125 = memref.load %arg1[%124] : memref<64xi32, #tpu.memory_space<smem>>
    %126 = arith.index_cast %125 : i32 to index
    %c0_46 = arith.constant 0 : index
    %127 = vector.load %arg2[%126, %c0_46] : memref<24x128xf32, #tpu.memory_space<vmem>>, vector<1x128xf32>
    %128 = arith.addf %121, %127 : vector<1x128xf32>
    %c16_i32_47 = arith.constant 16 : i32
    %129 = arith.addi %0, %c16_i32_47 : i32
    %c1_i32_48 = arith.constant 1 : i32
    %130 = arith.addi %129, %c1_i32_48 : i32
    %131 = arith.index_cast %130 : i32 to index
    %132 = memref.load %arg1[%131] : memref<64xi32, #tpu.memory_space<smem>>
    %133 = arith.index_cast %132 : i32 to index
    %c0_49 = arith.constant 0 : index
    %134 = vector.load %arg2[%133, %c0_49] : memref<24x128xf32, #tpu.memory_space<vmem>>, vector<1x128xf32>
    %135 = arith.addf %128, %134 : vector<1x128xf32>
    %c16_i32_50 = arith.constant 16 : i32
    %136 = arith.addi %0, %c16_i32_50 : i32
    %c2_i32_51 = arith.constant 2 : i32
    %137 = arith.addi %136, %c2_i32_51 : i32
    %138 = arith.index_cast %137 : i32 to index
    %139 = memref.load %arg1[%138] : memref<64xi32, #tpu.memory_space<smem>>
    %140 = arith.index_cast %139 : i32 to index
    %c0_52 = arith.constant 0 : index
    %141 = vector.load %arg2[%140, %c0_52] : memref<24x128xf32, #tpu.memory_space<vmem>>, vector<1x128xf32>
    %142 = arith.addf %135, %141 : vector<1x128xf32>
    %c16_i32_53 = arith.constant 16 : i32
    %143 = arith.addi %0, %c16_i32_53 : i32
    %c3_i32_54 = arith.constant 3 : i32
    %144 = arith.addi %143, %c3_i32_54 : i32
    %145 = arith.index_cast %144 : i32 to index
    %146 = memref.load %arg1[%145] : memref<64xi32, #tpu.memory_space<smem>>
    %147 = arith.index_cast %146 : i32 to index
    %c0_55 = arith.constant 0 : index
    %148 = vector.load %arg2[%147, %c0_55] : memref<24x128xf32, #tpu.memory_space<vmem>>, vector<1x128xf32>
    %149 = arith.addf %142, %148 : vector<1x128xf32>
    %c16_i32_56 = arith.constant 16 : i32
    %150 = arith.addi %0, %c16_i32_56 : i32
    %c4_i32_57 = arith.constant 4 : i32
    %151 = arith.addi %150, %c4_i32_57 : i32
    %152 = arith.index_cast %151 : i32 to index
    %153 = memref.load %arg1[%152] : memref<64xi32, #tpu.memory_space<smem>>
    %154 = arith.index_cast %153 : i32 to index
    %c0_58 = arith.constant 0 : index
    %155 = vector.load %arg2[%154, %c0_58] : memref<24x128xf32, #tpu.memory_space<vmem>>, vector<1x128xf32>
    %156 = arith.addf %149, %155 : vector<1x128xf32>
    %c16_i32_59 = arith.constant 16 : i32
    %157 = arith.addi %0, %c16_i32_59 : i32
    %c5_i32_60 = arith.constant 5 : i32
    %158 = arith.addi %157, %c5_i32_60 : i32
    %159 = arith.index_cast %158 : i32 to index
    %160 = memref.load %arg1[%159] : memref<64xi32, #tpu.memory_space<smem>>
    %161 = arith.index_cast %160 : i32 to index
    %c0_61 = arith.constant 0 : index
    %162 = vector.load %arg2[%161, %c0_61] : memref<24x128xf32, #tpu.memory_space<vmem>>, vector<1x128xf32>
    %163 = arith.addf %156, %162 : vector<1x128xf32>
    %c16_i32_62 = arith.constant 16 : i32
    %164 = arith.addi %0, %c16_i32_62 : i32
    %c6_i32_63 = arith.constant 6 : i32
    %165 = arith.addi %164, %c6_i32_63 : i32
    %166 = arith.index_cast %165 : i32 to index
    %167 = memref.load %arg1[%166] : memref<64xi32, #tpu.memory_space<smem>>
    %168 = arith.index_cast %167 : i32 to index
    %c0_64 = arith.constant 0 : index
    %169 = vector.load %arg2[%168, %c0_64] : memref<24x128xf32, #tpu.memory_space<vmem>>, vector<1x128xf32>
    %170 = arith.addf %163, %169 : vector<1x128xf32>
    %c16_i32_65 = arith.constant 16 : i32
    %171 = arith.addi %0, %c16_i32_65 : i32
    %c7_i32_66 = arith.constant 7 : i32
    %172 = arith.addi %171, %c7_i32_66 : i32
    %173 = arith.index_cast %172 : i32 to index
    %174 = memref.load %arg1[%173] : memref<64xi32, #tpu.memory_space<smem>>
    %175 = arith.index_cast %174 : i32 to index
    %c0_67 = arith.constant 0 : index
    %176 = vector.load %arg2[%175, %c0_67] : memref<24x128xf32, #tpu.memory_space<vmem>>, vector<1x128xf32>
    %177 = arith.addf %170, %176 : vector<1x128xf32>
    %cst_68 = arith.constant 1.250000e-01 : f32
    %178 = vector.broadcast %cst_68 : f32 to vector<1x128xf32>
    %179 = arith.mulf %177, %178 : vector<1x128xf32>
    %c2 = arith.constant 2 : index
    %c0_69 = arith.constant 0 : index
    %180 = vector.load %arg10[%c2, %c0_69] : memref<8x128xf32, #tpu.memory_space<vmem>>, vector<1x128xf32>
    tpu.vector_store %arg10[%c2, %c0_69], %179 {strides = array<i32>} : memref<8x128xf32, #tpu.memory_space<vmem>>, vector<1x128xf32>,
    %cst_70 = arith.constant 0.000000e+00 : f32
    %181 = vector.broadcast %cst_70 : f32 to vector<1x128xf32>
    %c24_i32 = arith.constant 24 : i32
    %182 = arith.addi %0, %c24_i32 : i32
    %c0_i32_71 = arith.constant 0 : i32
    %183 = arith.addi %182, %c0_i32_71 : i32
    %184 = arith.index_cast %183 : i32 to index
    %185 = memref.load %arg1[%184] : memref<64xi32, #tpu.memory_space<smem>>
    %186 = arith.index_cast %185 : i32 to index
    %c0_72 = arith.constant 0 : index
    %187 = vector.load %arg2[%186, %c0_72] : memref<24x128xf32, #tpu.memory_space<vmem>>, vector<1x128xf32>
    %188 = arith.addf %181, %187 : vector<1x128xf32>
    %c24_i32_73 = arith.constant 24 : i32
    %189 = arith.addi %0, %c24_i32_73 : i32
    %c1_i32_74 = arith.constant 1 : i32
    %190 = arith.addi %189, %c1_i32_74 : i32
    %191 = arith.index_cast %190 : i32 to index
    %192 = memref.load %arg1[%191] : memref<64xi32, #tpu.memory_space<smem>>
    %193 = arith.index_cast %192 : i32 to index
    %c0_75 = arith.constant 0 : index
    %194 = vector.load %arg2[%193, %c0_75] : memref<24x128xf32, #tpu.memory_space<vmem>>, vector<1x128xf32>
    %195 = arith.addf %188, %194 : vector<1x128xf32>
    %c24_i32_76 = arith.constant 24 : i32
    %196 = arith.addi %0, %c24_i32_76 : i32
    %c2_i32_77 = arith.constant 2 : i32
    %197 = arith.addi %196, %c2_i32_77 : i32
    %198 = arith.index_cast %197 : i32 to index
    %199 = memref.load %arg1[%198] : memref<64xi32, #tpu.memory_space<smem>>
    %200 = arith.index_cast %199 : i32 to index
    %c0_78 = arith.constant 0 : index
    %201 = vector.load %arg2[%200, %c0_78] : memref<24x128xf32, #tpu.memory_space<vmem>>, vector<1x128xf32>
    %202 = arith.addf %195, %201 : vector<1x128xf32>
    %c24_i32_79 = arith.constant 24 : i32
    %203 = arith.addi %0, %c24_i32_79 : i32
    %c3_i32_80 = arith.constant 3 : i32
    %204 = arith.addi %203, %c3_i32_80 : i32
    %205 = arith.index_cast %204 : i32 to index
    %206 = memref.load %arg1[%205] : memref<64xi32, #tpu.memory_space<smem>>
    %207 = arith.index_cast %206 : i32 to index
    %c0_81 = arith.constant 0 : index
    %208 = vector.load %arg2[%207, %c0_81] : memref<24x128xf32, #tpu.memory_space<vmem>>, vector<1x128xf32>
    %209 = arith.addf %202, %208 : vector<1x128xf32>
    %c24_i32_82 = arith.constant 24 : i32
    %210 = arith.addi %0, %c24_i32_82 : i32
    %c4_i32_83 = arith.constant 4 : i32
    %211 = arith.addi %210, %c4_i32_83 : i32
    %212 = arith.index_cast %211 : i32 to index
    %213 = memref.load %arg1[%212] : memref<64xi32, #tpu.memory_space<smem>>
    %214 = arith.index_cast %213 : i32 to index
    %c0_84 = arith.constant 0 : index
    %215 = vector.load %arg2[%214, %c0_84] : memref<24x128xf32, #tpu.memory_space<vmem>>, vector<1x128xf32>
    %216 = arith.addf %209, %215 : vector<1x128xf32>
    %c24_i32_85 = arith.constant 24 : i32
    %217 = arith.addi %0, %c24_i32_85 : i32
    %c5_i32_86 = arith.constant 5 : i32
    %218 = arith.addi %217, %c5_i32_86 : i32
    %219 = arith.index_cast %218 : i32 to index
    %220 = memref.load %arg1[%219] : memref<64xi32, #tpu.memory_space<smem>>
    %221 = arith.index_cast %220 : i32 to index
    %c0_87 = arith.constant 0 : index
    %222 = vector.load %arg2[%221, %c0_87] : memref<24x128xf32, #tpu.memory_space<vmem>>, vector<1x128xf32>
    %223 = arith.addf %216, %222 : vector<1x128xf32>
    %c24_i32_88 = arith.constant 24 : i32
    %224 = arith.addi %0, %c24_i32_88 : i32
    %c6_i32_89 = arith.constant 6 : i32
    %225 = arith.addi %224, %c6_i32_89 : i32
    %226 = arith.index_cast %225 : i32 to index
    %227 = memref.load %arg1[%226] : memref<64xi32, #tpu.memory_space<smem>>
    %228 = arith.index_cast %227 : i32 to index
    %c0_90 = arith.constant 0 : index
    %229 = vector.load %arg2[%228, %c0_90] : memref<24x128xf32, #tpu.memory_space<vmem>>, vector<1x128xf32>
    %230 = arith.addf %223, %229 : vector<1x128xf32>
    %c24_i32_91 = arith.constant 24 : i32
    %231 = arith.addi %0, %c24_i32_91 : i32
    %c7_i32_92 = arith.constant 7 : i32
    %232 = arith.addi %231, %c7_i32_92 : i32
    %233 = arith.index_cast %232 : i32 to index
    %234 = memref.load %arg1[%233] : memref<64xi32, #tpu.memory_space<smem>>
    %235 = arith.index_cast %234 : i32 to index
    %c0_93 = arith.constant 0 : index
    %236 = vector.load %arg2[%235, %c0_93] : memref<24x128xf32, #tpu.memory_space<vmem>>, vector<1x128xf32>
    %237 = arith.addf %230, %236 : vector<1x128xf32>
    %cst_94 = arith.constant 1.250000e-01 : f32
    %238 = vector.broadcast %cst_94 : f32 to vector<1x128xf32>
    %239 = arith.mulf %237, %238 : vector<1x128xf32>
    %c3 = arith.constant 3 : index
    %c0_95 = arith.constant 0 : index
    %240 = vector.load %arg10[%c3, %c0_95] : memref<8x128xf32, #tpu.memory_space<vmem>>, vector<1x128xf32>
    tpu.vector_store %arg10[%c3, %c0_95], %239 {strides = array<i32>} : memref<8x128xf32, #tpu.memory_space<vmem>>, vector<1x128xf32>,
    %cst_96 = arith.constant 0.000000e+00 : f32
    %241 = vector.broadcast %cst_96 : f32 to vector<1x128xf32>
    %c32_i32 = arith.constant 32 : i32
    %242 = arith.addi %0, %c32_i32 : i32
    %c0_i32_97 = arith.constant 0 : i32
    %243 = arith.addi %242, %c0_i32_97 : i32
    %244 = arith.index_cast %243 : i32 to index
    %245 = memref.load %arg1[%244] : memref<64xi32, #tpu.memory_space<smem>>
    %246 = arith.index_cast %245 : i32 to index
    %c0_98 = arith.constant 0 : index
    %247 = vector.load %arg2[%246, %c0_98] : memref<24x128xf32, #tpu.memory_space<vmem>>, vector<1x128xf32>
    %248 = arith.addf %241, %247 : vector<1x128xf32>
    %c32_i32_99 = arith.constant 32 : i32
    %249 = arith.addi %0, %c32_i32_99 : i32
    %c1_i32_100 = arith.constant 1 : i32
    %250 = arith.addi %249, %c1_i32_100 : i32
    %251 = arith.index_cast %250 : i32 to index
    %252 = memref.load %arg1[%251] : memref<64xi32, #tpu.memory_space<smem>>
    %253 = arith.index_cast %252 : i32 to index
    %c0_101 = arith.constant 0 : index
    %254 = vector.load %arg2[%253, %c0_101] : memref<24x128xf32, #tpu.memory_space<vmem>>, vector<1x128xf32>
    %255 = arith.addf %248, %254 : vector<1x128xf32>
    %c32_i32_102 = arith.constant 32 : i32
    %256 = arith.addi %0, %c32_i32_102 : i32
    %c2_i32_103 = arith.constant 2 : i32
    %257 = arith.addi %256, %c2_i32_103 : i32
    %258 = arith.index_cast %257 : i32 to index
    %259 = memref.load %arg1[%258] : memref<64xi32, #tpu.memory_space<smem>>
    %260 = arith.index_cast %259 : i32 to index
    %c0_104 = arith.constant 0 : index
    %261 = vector.load %arg2[%260, %c0_104] : memref<24x128xf32, #tpu.memory_space<vmem>>, vector<1x128xf32>
    %262 = arith.addf %255, %261 : vector<1x128xf32>
    %c32_i32_105 = arith.constant 32 : i32
    %263 = arith.addi %0, %c32_i32_105 : i32
    %c3_i32_106 = arith.constant 3 : i32
    %264 = arith.addi %263, %c3_i32_106 : i32
    %265 = arith.index_cast %264 : i32 to index
    %266 = memref.load %arg1[%265] : memref<64xi32, #tpu.memory_space<smem>>
    %267 = arith.index_cast %266 : i32 to index
    %c0_107 = arith.constant 0 : index
    %268 = vector.load %arg2[%267, %c0_107] : memref<24x128xf32, #tpu.memory_space<vmem>>, vector<1x128xf32>
    %269 = arith.addf %262, %268 : vector<1x128xf32>
    %c32_i32_108 = arith.constant 32 : i32
    %270 = arith.addi %0, %c32_i32_108 : i32
    %c4_i32_109 = arith.constant 4 : i32
    %271 = arith.addi %270, %c4_i32_109 : i32
    %272 = arith.index_cast %271 : i32 to index
    %273 = memref.load %arg1[%272] : memref<64xi32, #tpu.memory_space<smem>>
    %274 = arith.index_cast %273 : i32 to index
    %c0_110 = arith.constant 0 : index
    %275 = vector.load %arg2[%274, %c0_110] : memref<24x128xf32, #tpu.memory_space<vmem>>, vector<1x128xf32>
    %276 = arith.addf %269, %275 : vector<1x128xf32>
    %c32_i32_111 = arith.constant 32 : i32
    %277 = arith.addi %0, %c32_i32_111 : i32
    %c5_i32_112 = arith.constant 5 : i32
    %278 = arith.addi %277, %c5_i32_112 : i32
    %279 = arith.index_cast %278 : i32 to index
    %280 = memref.load %arg1[%279] : memref<64xi32, #tpu.memory_space<smem>>
    %281 = arith.index_cast %280 : i32 to index
    %c0_113 = arith.constant 0 : index
    %282 = vector.load %arg2[%281, %c0_113] : memref<24x128xf32, #tpu.memory_space<vmem>>, vector<1x128xf32>
    %283 = arith.addf %276, %282 : vector<1x128xf32>
    %c32_i32_114 = arith.constant 32 : i32
    %284 = arith.addi %0, %c32_i32_114 : i32
    %c6_i32_115 = arith.constant 6 : i32
    %285 = arith.addi %284, %c6_i32_115 : i32
    %286 = arith.index_cast %285 : i32 to index
    %287 = memref.load %arg1[%286] : memref<64xi32, #tpu.memory_space<smem>>
    %288 = arith.index_cast %287 : i32 to index
    %c0_116 = arith.constant 0 : index
    %289 = vector.load %arg2[%288, %c0_116] : memref<24x128xf32, #tpu.memory_space<vmem>>, vector<1x128xf32>
    %290 = arith.addf %283, %289 : vector<1x128xf32>
    %c32_i32_117 = arith.constant 32 : i32
    %291 = arith.addi %0, %c32_i32_117 : i32
    %c7_i32_118 = arith.constant 7 : i32
    %292 = arith.addi %291, %c7_i32_118 : i32
    %293 = arith.index_cast %292 : i32 to index
    %294 = memref.load %arg1[%293] : memref<64xi32, #tpu.memory_space<smem>>
    %295 = arith.index_cast %294 : i32 to index
    %c0_119 = arith.constant 0 : index
    %296 = vector.load %arg2[%295, %c0_119] : memref<24x128xf32, #tpu.memory_space<vmem>>, vector<1x128xf32>
    %297 = arith.addf %290, %296 : vector<1x128xf32>
    %cst_120 = arith.constant 1.250000e-01 : f32
    %298 = vector.broadcast %cst_120 : f32 to vector<1x128xf32>
    %299 = arith.mulf %297, %298 : vector<1x128xf32>
    %c4 = arith.constant 4 : index
    %c0_121 = arith.constant 0 : index
    %300 = vector.load %arg10[%c4, %c0_121] : memref<8x128xf32, #tpu.memory_space<vmem>>, vector<1x128xf32>
    tpu.vector_store %arg10[%c4, %c0_121], %299 {strides = array<i32>} : memref<8x128xf32, #tpu.memory_space<vmem>>, vector<1x128xf32>,
    %cst_122 = arith.constant 0.000000e+00 : f32
    %301 = vector.broadcast %cst_122 : f32 to vector<1x128xf32>
    %c40_i32 = arith.constant 40 : i32
    %302 = arith.addi %0, %c40_i32 : i32
    %c0_i32_123 = arith.constant 0 : i32
    %303 = arith.addi %302, %c0_i32_123 : i32
    %304 = arith.index_cast %303 : i32 to index
    %305 = memref.load %arg1[%304] : memref<64xi32, #tpu.memory_space<smem>>
    %306 = arith.index_cast %305 : i32 to index
    %c0_124 = arith.constant 0 : index
    %307 = vector.load %arg2[%306, %c0_124] : memref<24x128xf32, #tpu.memory_space<vmem>>, vector<1x128xf32>
    %308 = arith.addf %301, %307 : vector<1x128xf32>
    %c40_i32_125 = arith.constant 40 : i32
    %309 = arith.addi %0, %c40_i32_125 : i32
    %c1_i32_126 = arith.constant 1 : i32
    %310 = arith.addi %309, %c1_i32_126 : i32
    %311 = arith.index_cast %310 : i32 to index
    %312 = memref.load %arg1[%311] : memref<64xi32, #tpu.memory_space<smem>>
    %313 = arith.index_cast %312 : i32 to index
    %c0_127 = arith.constant 0 : index
    %314 = vector.load %arg2[%313, %c0_127] : memref<24x128xf32, #tpu.memory_space<vmem>>, vector<1x128xf32>
    %315 = arith.addf %308, %314 : vector<1x128xf32>
    %c40_i32_128 = arith.constant 40 : i32
    %316 = arith.addi %0, %c40_i32_128 : i32
    %c2_i32_129 = arith.constant 2 : i32
    %317 = arith.addi %316, %c2_i32_129 : i32
    %318 = arith.index_cast %317 : i32 to index
    %319 = memref.load %arg1[%318] : memref<64xi32, #tpu.memory_space<smem>>
    %320 = arith.index_cast %319 : i32 to index
    %c0_130 = arith.constant 0 : index
    %321 = vector.load %arg2[%320, %c0_130] : memref<24x128xf32, #tpu.memory_space<vmem>>, vector<1x128xf32>
    %322 = arith.addf %315, %321 : vector<1x128xf32>
    %c40_i32_131 = arith.constant 40 : i32
    %323 = arith.addi %0, %c40_i32_131 : i32
    %c3_i32_132 = arith.constant 3 : i32
    %324 = arith.addi %323, %c3_i32_132 : i32
    %325 = arith.index_cast %324 : i32 to index
    %326 = memref.load %arg1[%325] : memref<64xi32, #tpu.memory_space<smem>>
    %327 = arith.index_cast %326 : i32 to index
    %c0_133 = arith.constant 0 : index
    %328 = vector.load %arg2[%327, %c0_133] : memref<24x128xf32, #tpu.memory_space<vmem>>, vector<1x128xf32>
    %329 = arith.addf %322, %328 : vector<1x128xf32>
    %c40_i32_134 = arith.constant 40 : i32
    %330 = arith.addi %0, %c40_i32_134 : i32
    %c4_i32_135 = arith.constant 4 : i32
    %331 = arith.addi %330, %c4_i32_135 : i32
    %332 = arith.index_cast %331 : i32 to index
    %333 = memref.load %arg1[%332] : memref<64xi32, #tpu.memory_space<smem>>
    %334 = arith.index_cast %333 : i32 to index
    %c0_136 = arith.constant 0 : index
    %335 = vector.load %arg2[%334, %c0_136] : memref<24x128xf32, #tpu.memory_space<vmem>>, vector<1x128xf32>
    %336 = arith.addf %329, %335 : vector<1x128xf32>
    %c40_i32_137 = arith.constant 40 : i32
    %337 = arith.addi %0, %c40_i32_137 : i32
    %c5_i32_138 = arith.constant 5 : i32
    %338 = arith.addi %337, %c5_i32_138 : i32
    %339 = arith.index_cast %338 : i32 to index
    %340 = memref.load %arg1[%339] : memref<64xi32, #tpu.memory_space<smem>>
    %341 = arith.index_cast %340 : i32 to index
    %c0_139 = arith.constant 0 : index
    %342 = vector.load %arg2[%341, %c0_139] : memref<24x128xf32, #tpu.memory_space<vmem>>, vector<1x128xf32>
    %343 = arith.addf %336, %342 : vector<1x128xf32>
    %c40_i32_140 = arith.constant 40 : i32
    %344 = arith.addi %0, %c40_i32_140 : i32
    %c6_i32_141 = arith.constant 6 : i32
    %345 = arith.addi %344, %c6_i32_141 : i32
    %346 = arith.index_cast %345 : i32 to index
    %347 = memref.load %arg1[%346] : memref<64xi32, #tpu.memory_space<smem>>
    %348 = arith.index_cast %347 : i32 to index
    %c0_142 = arith.constant 0 : index
    %349 = vector.load %arg2[%348, %c0_142] : memref<24x128xf32, #tpu.memory_space<vmem>>, vector<1x128xf32>
    %350 = arith.addf %343, %349 : vector<1x128xf32>
    %c40_i32_143 = arith.constant 40 : i32
    %351 = arith.addi %0, %c40_i32_143 : i32
    %c7_i32_144 = arith.constant 7 : i32
    %352 = arith.addi %351, %c7_i32_144 : i32
    %353 = arith.index_cast %352 : i32 to index
    %354 = memref.load %arg1[%353] : memref<64xi32, #tpu.memory_space<smem>>
    %355 = arith.index_cast %354 : i32 to index
    %c0_145 = arith.constant 0 : index
    %356 = vector.load %arg2[%355, %c0_145] : memref<24x128xf32, #tpu.memory_space<vmem>>, vector<1x128xf32>
    %357 = arith.addf %350, %356 : vector<1x128xf32>
    %cst_146 = arith.constant 1.250000e-01 : f32
    %358 = vector.broadcast %cst_146 : f32 to vector<1x128xf32>
    %359 = arith.mulf %357, %358 : vector<1x128xf32>
    %c5 = arith.constant 5 : index
    %c0_147 = arith.constant 0 : index
    %360 = vector.load %arg10[%c5, %c0_147] : memref<8x128xf32, #tpu.memory_space<vmem>>, vector<1x128xf32>
    tpu.vector_store %arg10[%c5, %c0_147], %359 {strides = array<i32>} : memref<8x128xf32, #tpu.memory_space<vmem>>, vector<1x128xf32>,
    %cst_148 = arith.constant 0.000000e+00 : f32
    %361 = vector.broadcast %cst_148 : f32 to vector<1x128xf32>
    %c48_i32 = arith.constant 48 : i32
    %362 = arith.addi %0, %c48_i32 : i32
    %c0_i32_149 = arith.constant 0 : i32
    %363 = arith.addi %362, %c0_i32_149 : i32
    %364 = arith.index_cast %363 : i32 to index
    %365 = memref.load %arg1[%364] : memref<64xi32, #tpu.memory_space<smem>>
    %366 = arith.index_cast %365 : i32 to index
    %c0_150 = arith.constant 0 : index
    %367 = vector.load %arg2[%366, %c0_150] : memref<24x128xf32, #tpu.memory_space<vmem>>, vector<1x128xf32>
    %368 = arith.addf %361, %367 : vector<1x128xf32>
    %c48_i32_151 = arith.constant 48 : i32
    %369 = arith.addi %0, %c48_i32_151 : i32
    %c1_i32_152 = arith.constant 1 : i32
    %370 = arith.addi %369, %c1_i32_152 : i32
    %371 = arith.index_cast %370 : i32 to index
    %372 = memref.load %arg1[%371] : memref<64xi32, #tpu.memory_space<smem>>
    %373 = arith.index_cast %372 : i32 to index
    %c0_153 = arith.constant 0 : index
    %374 = vector.load %arg2[%373, %c0_153] : memref<24x128xf32, #tpu.memory_space<vmem>>, vector<1x128xf32>
    %375 = arith.addf %368, %374 : vector<1x128xf32>
    %c48_i32_154 = arith.constant 48 : i32
    %376 = arith.addi %0, %c48_i32_154 : i32
    %c2_i32_155 = arith.constant 2 : i32
    %377 = arith.addi %376, %c2_i32_155 : i32
    %378 = arith.index_cast %377 : i32 to index
    %379 = memref.load %arg1[%378] : memref<64xi32, #tpu.memory_space<smem>>
    %380 = arith.index_cast %379 : i32 to index
    %c0_156 = arith.constant 0 : index
    %381 = vector.load %arg2[%380, %c0_156] : memref<24x128xf32, #tpu.memory_space<vmem>>, vector<1x128xf32>
    %382 = arith.addf %375, %381 : vector<1x128xf32>
    %c48_i32_157 = arith.constant 48 : i32
    %383 = arith.addi %0, %c48_i32_157 : i32
    %c3_i32_158 = arith.constant 3 : i32
    %384 = arith.addi %383, %c3_i32_158 : i32
    %385 = arith.index_cast %384 : i32 to index
    %386 = memref.load %arg1[%385] : memref<64xi32, #tpu.memory_space<smem>>
    %387 = arith.index_cast %386 : i32 to index
    %c0_159 = arith.constant 0 : index
    %388 = vector.load %arg2[%387, %c0_159] : memref<24x128xf32, #tpu.memory_space<vmem>>, vector<1x128xf32>
    %389 = arith.addf %382, %388 : vector<1x128xf32>
    %c48_i32_160 = arith.constant 48 : i32
    %390 = arith.addi %0, %c48_i32_160 : i32
    %c4_i32_161 = arith.constant 4 : i32
    %391 = arith.addi %390, %c4_i32_161 : i32
    %392 = arith.index_cast %391 : i32 to index
    %393 = memref.load %arg1[%392] : memref<64xi32, #tpu.memory_space<smem>>
    %394 = arith.index_cast %393 : i32 to index
    %c0_162 = arith.constant 0 : index
    %395 = vector.load %arg2[%394, %c0_162] : memref<24x128xf32, #tpu.memory_space<vmem>>, vector<1x128xf32>
    %396 = arith.addf %389, %395 : vector<1x128xf32>
    %c48_i32_163 = arith.constant 48 : i32
    %397 = arith.addi %0, %c48_i32_163 : i32
    %c5_i32_164 = arith.constant 5 : i32
    %398 = arith.addi %397, %c5_i32_164 : i32
    %399 = arith.index_cast %398 : i32 to index
    %400 = memref.load %arg1[%399] : memref<64xi32, #tpu.memory_space<smem>>
    %401 = arith.index_cast %400 : i32 to index
    %c0_165 = arith.constant 0 : index
    %402 = vector.load %arg2[%401, %c0_165] : memref<24x128xf32, #tpu.memory_space<vmem>>, vector<1x128xf32>
    %403 = arith.addf %396, %402 : vector<1x128xf32>
    %c48_i32_166 = arith.constant 48 : i32
    %404 = arith.addi %0, %c48_i32_166 : i32
    %c6_i32_167 = arith.constant 6 : i32
    %405 = arith.addi %404, %c6_i32_167 : i32
    %406 = arith.index_cast %405 : i32 to index
    %407 = memref.load %arg1[%406] : memref<64xi32, #tpu.memory_space<smem>>
    %408 = arith.index_cast %407 : i32 to index
    %c0_168 = arith.constant 0 : index
    %409 = vector.load %arg2[%408, %c0_168] : memref<24x128xf32, #tpu.memory_space<vmem>>, vector<1x128xf32>
    %410 = arith.addf %403, %409 : vector<1x128xf32>
    %c48_i32_169 = arith.constant 48 : i32
    %411 = arith.addi %0, %c48_i32_169 : i32
    %c7_i32_170 = arith.constant 7 : i32
    %412 = arith.addi %411, %c7_i32_170 : i32
    %413 = arith.index_cast %412 : i32 to index
    %414 = memref.load %arg1[%413] : memref<64xi32, #tpu.memory_space<smem>>
    %415 = arith.index_cast %414 : i32 to index
    %c0_171 = arith.constant 0 : index
    %416 = vector.load %arg2[%415, %c0_171] : memref<24x128xf32, #tpu.memory_space<vmem>>, vector<1x128xf32>
    %417 = arith.addf %410, %416 : vector<1x128xf32>
    %cst_172 = arith.constant 1.250000e-01 : f32
    %418 = vector.broadcast %cst_172 : f32 to vector<1x128xf32>
    %419 = arith.mulf %417, %418 : vector<1x128xf32>
    %c6 = arith.constant 6 : index
    %c0_173 = arith.constant 0 : index
    %420 = vector.load %arg10[%c6, %c0_173] : memref<8x128xf32, #tpu.memory_space<vmem>>, vector<1x128xf32>
    tpu.vector_store %arg10[%c6, %c0_173], %419 {strides = array<i32>} : memref<8x128xf32, #tpu.memory_space<vmem>>, vector<1x128xf32>,
    %cst_174 = arith.constant 0.000000e+00 : f32
    %421 = vector.broadcast %cst_174 : f32 to vector<1x128xf32>
    %c56_i32 = arith.constant 56 : i32
    %422 = arith.addi %0, %c56_i32 : i32
    %c0_i32_175 = arith.constant 0 : i32
    %423 = arith.addi %422, %c0_i32_175 : i32
    %424 = arith.index_cast %423 : i32 to index
    %425 = memref.load %arg1[%424] : memref<64xi32, #tpu.memory_space<smem>>
    %426 = arith.index_cast %425 : i32 to index
    %c0_176 = arith.constant 0 : index
    %427 = vector.load %arg2[%426, %c0_176] : memref<24x128xf32, #tpu.memory_space<vmem>>, vector<1x128xf32>
    %428 = arith.addf %421, %427 : vector<1x128xf32>
    %c56_i32_177 = arith.constant 56 : i32
    %429 = arith.addi %0, %c56_i32_177 : i32
    %c1_i32_178 = arith.constant 1 : i32
    %430 = arith.addi %429, %c1_i32_178 : i32
    %431 = arith.index_cast %430 : i32 to index
    %432 = memref.load %arg1[%431] : memref<64xi32, #tpu.memory_space<smem>>
    %433 = arith.index_cast %432 : i32 to index
    %c0_179 = arith.constant 0 : index
    %434 = vector.load %arg2[%433, %c0_179] : memref<24x128xf32, #tpu.memory_space<vmem>>, vector<1x128xf32>
    %435 = arith.addf %428, %434 : vector<1x128xf32>
    %c56_i32_180 = arith.constant 56 : i32
    %436 = arith.addi %0, %c56_i32_180 : i32
    %c2_i32_181 = arith.constant 2 : i32
    %437 = arith.addi %436, %c2_i32_181 : i32
    %438 = arith.index_cast %437 : i32 to index
    %439 = memref.load %arg1[%438] : memref<64xi32, #tpu.memory_space<smem>>
    %440 = arith.index_cast %439 : i32 to index
    %c0_182 = arith.constant 0 : index
    %441 = vector.load %arg2[%440, %c0_182] : memref<24x128xf32, #tpu.memory_space<vmem>>, vector<1x128xf32>
    %442 = arith.addf %435, %441 : vector<1x128xf32>
    %c56_i32_183 = arith.constant 56 : i32
    %443 = arith.addi %0, %c56_i32_183 : i32
    %c3_i32_184 = arith.constant 3 : i32
    %444 = arith.addi %443, %c3_i32_184 : i32
    %445 = arith.index_cast %444 : i32 to index
    %446 = memref.load %arg1[%445] : memref<64xi32, #tpu.memory_space<smem>>
    %447 = arith.index_cast %446 : i32 to index
    %c0_185 = arith.constant 0 : index
    %448 = vector.load %arg2[%447, %c0_185] : memref<24x128xf32, #tpu.memory_space<vmem>>, vector<1x128xf32>
    %449 = arith.addf %442, %448 : vector<1x128xf32>
    %c56_i32_186 = arith.constant 56 : i32
    %450 = arith.addi %0, %c56_i32_186 : i32
    %c4_i32_187 = arith.constant 4 : i32
    %451 = arith.addi %450, %c4_i32_187 : i32
    %452 = arith.index_cast %451 : i32 to index
    %453 = memref.load %arg1[%452] : memref<64xi32, #tpu.memory_space<smem>>
    %454 = arith.index_cast %453 : i32 to index
    %c0_188 = arith.constant 0 : index
    %455 = vector.load %arg2[%454, %c0_188] : memref<24x128xf32, #tpu.memory_space<vmem>>, vector<1x128xf32>
    %456 = arith.addf %449, %455 : vector<1x128xf32>
    %c56_i32_189 = arith.constant 56 : i32
    %457 = arith.addi %0, %c56_i32_189 : i32
    %c5_i32_190 = arith.constant 5 : i32
    %458 = arith.addi %457, %c5_i32_190 : i32
    %459 = arith.index_cast %458 : i32 to index
    %460 = memref.load %arg1[%459] : memref<64xi32, #tpu.memory_space<smem>>
    %461 = arith.index_cast %460 : i32 to index
    %c0_191 = arith.constant 0 : index
    %462 = vector.load %arg2[%461, %c0_191] : memref<24x128xf32, #tpu.memory_space<vmem>>, vector<1x128xf32>
    %463 = arith.addf %456, %462 : vector<1x128xf32>
    %c56_i32_192 = arith.constant 56 : i32
    %464 = arith.addi %0, %c56_i32_192 : i32
    %c6_i32_193 = arith.constant 6 : i32
    %465 = arith.addi %464, %c6_i32_193 : i32
    %466 = arith.index_cast %465 : i32 to index
    %467 = memref.load %arg1[%466] : memref<64xi32, #tpu.memory_space<smem>>
    %468 = arith.index_cast %467 : i32 to index
    %c0_194 = arith.constant 0 : index
    %469 = vector.load %arg2[%468, %c0_194] : memref<24x128xf32, #tpu.memory_space<vmem>>, vector<1x128xf32>
    %470 = arith.addf %463, %469 : vector<1x128xf32>
    %c56_i32_195 = arith.constant 56 : i32
    %471 = arith.addi %0, %c56_i32_195 : i32
    %c7_i32_196 = arith.constant 7 : i32
    %472 = arith.addi %471, %c7_i32_196 : i32
    %473 = arith.index_cast %472 : i32 to index
    %474 = memref.load %arg1[%473] : memref<64xi32, #tpu.memory_space<smem>>
    %475 = arith.index_cast %474 : i32 to index
    %c0_197 = arith.constant 0 : index
    %476 = vector.load %arg2[%475, %c0_197] : memref<24x128xf32, #tpu.memory_space<vmem>>, vector<1x128xf32>
    %477 = arith.addf %470, %476 : vector<1x128xf32>
    %cst_198 = arith.constant 1.250000e-01 : f32
    %478 = vector.broadcast %cst_198 : f32 to vector<1x128xf32>
    %479 = arith.mulf %477, %478 : vector<1x128xf32>
    %c7 = arith.constant 7 : index
    %c0_199 = arith.constant 0 : index
    %480 = vector.load %arg10[%c7, %c0_199] : memref<8x128xf32, #tpu.memory_space<vmem>>, vector<1x128xf32>
    tpu.vector_store %arg10[%c7, %c0_199], %479 {strides = array<i32>} : memref<8x128xf32, #tpu.memory_space<vmem>>, vector<1x128xf32>,
    %c0_200 = arith.constant 0 : index
    %c0_201 = arith.constant 0 : index
    %481 = vector.load %arg10[%c0_200, %c0_201] : memref<8x128xf32, #tpu.memory_space<vmem>>, vector<8x128xf32>
    %482 = arith.truncf %481 : vector<8x128xf32> to vector<8x128xbf16>
    %c0_202 = arith.constant 0 : index
    %c0_203 = arith.constant 0 : index
    %483 = vector.load %arg3[%c0_202, %c0_203] : memref<128x128xbf16, #tpu.memory_space<vmem>>, vector<128x128xbf16>
    %cst_204 = arith.constant dense<0.000000e+00> : vector<8x128xf32>
    %484 = tpu.matmul %482, %483, %cst_204 {dimension_numbers = #tpu.dot_dimension_numbers<[1], [0], [0], [1], [0, 0, 1, 1], [], []>} : vector<8x128xbf16>, vector<128x128xbf16>, vector<8x128xf32> -> vector<8x128xf32>
    %c0_205 = arith.constant 0 : index
    %c0_206 = arith.constant 0 : index
    %485 = vector.load %arg4[%c0_205, %c0_206] : memref<1x128xf32, #tpu.memory_space<vmem>>, vector<1x128xf32>
    %486 = vector.broadcast %485 : vector<1x128xf32> to vector<8x128xf32>
    %487 = arith.addf %484, %486 : vector<8x128xf32>
    %cst_207 = arith.constant 0.000000e+00 : f32
    %488 = vector.broadcast %cst_207 : f32 to vector<8x128xf32>
    %489 = arith.maximumf %487, %488 : vector<8x128xf32>
    %490 = arith.truncf %489 : vector<8x128xf32> to vector<8x128xbf16>
    %c0_208 = arith.constant 0 : index
    %c0_209 = arith.constant 0 : index
    %491 = vector.load %arg5[%c0_208, %c0_209] : memref<128x128xbf16, #tpu.memory_space<vmem>>, vector<128x128xbf16>
    %cst_210 = arith.constant dense<0.000000e+00> : vector<8x128xf32>
    %492 = tpu.matmul %490, %491, %cst_210 {dimension_numbers = #tpu.dot_dimension_numbers<[1], [0], [0], [1], [0, 0, 1, 1], [], []>} : vector<8x128xbf16>, vector<128x128xbf16>, vector<8x128xf32> -> vector<8x128xf32>
    %c0_211 = arith.constant 0 : index
    %c0_212 = arith.constant 0 : index
    %493 = vector.load %arg6[%c0_211, %c0_212] : memref<1x128xf32, #tpu.memory_space<vmem>>, vector<1x128xf32>
    %494 = vector.broadcast %493 : vector<1x128xf32> to vector<8x128xf32>
    %495 = arith.addf %492, %494 : vector<8x128xf32>
    %496 = tpu.iota {dimensions = array<i32: 1>} : vector<8x128xi32>
    %c4_i32_213 = arith.constant 4 : i32
    %497 = vector.broadcast %c4_i32_213 : i32 to vector<8x128xi32>
    %498 = arith.cmpi slt, %496, %497 : vector<8x128xi32>
    %cst_214 = arith.constant -1.000000e+30 : f32
    %499 = vector.broadcast %cst_214 : f32 to vector<8x128xf32>
    %500 = arith.select %498, %495, %499 : vector<8x128xi1>, vector<8x128xf32>
    %cst_215 = arith.constant dense<0xFF800000> : vector<8xf32>
    %501 = vector.multi_reduction <maximumf>, %500, %cst_215 [1] : vector<8x128xf32> to vector<8xf32>
    %502 = vector.shape_cast %501 : vector<8xf32> to vector<8x1xf32>
    %503 = vector.broadcast %502 : vector<8x1xf32> to vector<8x128xf32>
    %504 = arith.subf %500, %503 : vector<8x128xf32>
    %505 = math.exp %504 : vector<8x128xf32>
    %cst_216 = arith.constant dense<0.000000e+00> : vector<8xf32>
    %506 = vector.multi_reduction <add>, %505, %cst_216 [1] : vector<8x128xf32> to vector<8xf32>
    %507 = vector.shape_cast %506 : vector<8xf32> to vector<8x1xf32>
    %508 = tpu.reciprocal %507 {approx = true} : vector<8x1xf32> -> vector<8x1xf32>
    %509 = vector.broadcast %508 : vector<8x1xf32> to vector<8x128xf32>
    %510 = arith.mulf %505, %509 : vector<8x128xf32>
    %511 = tpu.iota {dimensions = array<i32: 0>} : vector<128x128xi32>
    %512 = tpu.iota {dimensions = array<i32: 1>} : vector<128x128xi32>
    %c8_i32_217 = arith.constant 8 : i32
    %513 = vector.broadcast %c8_i32_217 : i32 to vector<128x128xi32>
    %514 = arith.muli %511, %513 : vector<128x128xi32>
    %515 = arith.cmpi sge, %512, %514 : vector<128x128xi32>
    %c8_i32_218 = arith.constant 8 : i32
    %516 = vector.broadcast %c8_i32_218 : i32 to vector<128x128xi32>
    %517 = arith.addi %514, %516 : vector<128x128xi32>
    %518 = arith.cmpi slt, %512, %517 : vector<128x128xi32>
    %519 = arith.andi %515, %518 : vector<128x128xi1>
    %cst_219 = arith.constant 1.000000e+00 : f32
    %cst_220 = arith.constant 0.000000e+00 : f32
    %520 = vector.broadcast %cst_219 : f32 to vector<128x128xf32>
    %521 = vector.broadcast %cst_220 : f32 to vector<128x128xf32>
    %522 = arith.select %519, %520, %521 : vector<128x128xi1>, vector<128x128xf32>
    %523 = arith.truncf %522 : vector<128x128xf32> to vector<128x128xbf16>
    %524 = arith.truncf %510 : vector<8x128xf32> to vector<8x128xbf16>
    %cst_221 = arith.constant dense<0.000000e+00> : vector<8x128xf32>
    %525 = tpu.matmul %524, %523, %cst_221 {dimension_numbers = #tpu.dot_dimension_numbers<[1], [0], [0], [1], [0, 0, 1, 1], [], []>} : vector<8x128xbf16>, vector<128x128xbf16>, vector<8x128xf32> -> vector<8x128xf32>
    %526 = arith.mulf %489, %525 : vector<8x128xf32>
    %527 = arith.truncf %526 : vector<8x128xf32> to vector<8x128xbf16>
    %c0_222 = arith.constant 0 : index
    %c0_223 = arith.constant 0 : index
    %528 = vector.load %arg7[%c0_222, %c0_223] : memref<128x128xbf16, #tpu.memory_space<vmem>>, vector<128x128xbf16>
    %cst_224 = arith.constant dense<0.000000e+00> : vector<8x128xf32>
    %529 = tpu.matmul %527, %528, %cst_224 {dimension_numbers = #tpu.dot_dimension_numbers<[1], [0], [0], [1], [0, 0, 1, 1], [], []>} : vector<8x128xbf16>, vector<128x128xbf16>, vector<8x128xf32> -> vector<8x128xf32>
    %c0_225 = arith.constant 0 : index
    %c0_226 = arith.constant 0 : index
    %530 = vector.load %arg8[%c0_225, %c0_226] : memref<1x128xf32, #tpu.memory_space<vmem>>, vector<1x128xf32>
    %531 = vector.broadcast %530 : vector<1x128xf32> to vector<8x128xf32>
    %532 = arith.addf %529, %531 : vector<8x128xf32>
    %c0_227 = arith.constant 0 : index
    %c0_228 = arith.constant 0 : index
    %533 = vector.load %arg9[%c0_227, %c0_228] : memref<8x128xf32, #tpu.memory_space<vmem>>, vector<8x128xf32>
    tpu.vector_store %arg9[%c0_227, %c0_228], %532 {strides = array<i32>} : memref<8x128xf32, #tpu.memory_space<vmem>>, vector<8x128xf32>,
    return
  }
  func.func @transform_0(%arg0: i32, %arg1: memref<64xi32, #tpu.memory_space<smem>>) -> (i32, i32) {
    %c0_i32 = arith.constant 0 : i32
    %c0_i32_0 = arith.constant 0 : i32
    %c0_i32_1 = arith.constant 0 : i32
    return %c0_i32, %c0_i32_0 : i32, i32
  }
  func.func @transform_1(%arg0: i32, %arg1: memref<64xi32, #tpu.memory_space<smem>>) -> (i32, i32) {
    %c0_i32 = arith.constant 0 : i32
    %c0_i32_0 = arith.constant 0 : i32
    %c0_i32_1 = arith.constant 0 : i32
    return %c0_i32, %c0_i32_0 : i32, i32
  }
  func.func @transform_2(%arg0: i32, %arg1: memref<64xi32, #tpu.memory_space<smem>>) -> (i32, i32) {
    %c0_i32 = arith.constant 0 : i32
    %c0_i32_0 = arith.constant 0 : i32
    %c0_i32_1 = arith.constant 0 : i32
    return %c0_i32, %c0_i32_0 : i32, i32
  }
  func.func @transform_3(%arg0: i32, %arg1: memref<64xi32, #tpu.memory_space<smem>>) -> (i32, i32) {
    %c0_i32 = arith.constant 0 : i32
    %c0_i32_0 = arith.constant 0 : i32
    %c0_i32_1 = arith.constant 0 : i32
    return %c0_i32, %c0_i32_0 : i32, i32
  }
  func.func @transform_4(%arg0: i32, %arg1: memref<64xi32, #tpu.memory_space<smem>>) -> (i32, i32) {
    %c0_i32 = arith.constant 0 : i32
    %c0_i32_0 = arith.constant 0 : i32
    %c0_i32_1 = arith.constant 0 : i32
    return %c0_i32, %c0_i32_0 : i32, i32
  }
  func.func @transform_5(%arg0: i32, %arg1: memref<64xi32, #tpu.memory_space<smem>>) -> (i32, i32) {
    %c0_i32 = arith.constant 0 : i32
    %c0_i32_0 = arith.constant 0 : i32
    %c0_i32_1 = arith.constant 0 : i32
    return %c0_i32, %c0_i32_0 : i32, i32
  }
  func.func @transform_6(%arg0: i32, %arg1: memref<64xi32, #tpu.memory_space<smem>>) -> (i32, i32) {
    %c0_i32 = arith.constant 0 : i32
    %c0_i32_0 = arith.constant 0 : i32
    %c0_i32_1 = arith.constant 0 : i32
    return %c0_i32, %c0_i32_0 : i32, i32
  }
  func.func @transform_7(%arg0: i32, %arg1: memref<64xi32, #tpu.memory_space<smem>>) -> (i32, i32) {
    %c0_i32 = arith.constant 0 : i32
    %c0_i32_0 = arith.constant 0 : i32
    return %arg0, %c0_i32 : i32, i32
  }
}

</mosaic_0001>

<llo_original>
// kernel: tpu_custom_call.1
$region0: #{tpu_custom_call.1}
  #allocation0 [shape = 'u32[]', space=smem, size = 0x4, offset = 0x4, fixed_abs, tag = 'smem constant byte address 0x4 - core index']
  #allocation1 [shape = 'u32[144,128]{1,0:T(1,128)}', space=vmem, size = 0x12000, scoped, tag = 'internal scratch']
  #allocation2 [shape = 'f32[8,128]{1,0:T(8,128)}', space=vmem, size = 0x1000, scoped, tag = 'scratch operand']
  #allocation3 [shape = 's32[1]{0}', space=sflag, size = 0x4, scoped, tag = 'scoped memory for tpu_custom_call.1']
  #allocation4 [shape = 'u8[512]{0}', space=smem, size = 0x200, scoped, tag = 'prefetched SMEM operand 0']
  %s0 = inlined_call_operand.hbm [shape: s32[64], index: 0, kind: input, shape index: {}]
  %s1 = inlined_call_operand.hbm [shape: f32[24,128], index: 1, kind: input, shape index: {}]
  %s2 = inlined_call_operand.hbm [shape: bf16[128,128], index: 2, kind: input, shape index: {}]
  %s3 = inlined_call_operand.vmem [shape: f32[1,128], index: 3, kind: input, shape index: {}]
  %s4 = inlined_call_operand.hbm [shape: bf16[128,128], index: 4, kind: input, shape index: {}]
  %s5 = inlined_call_operand.vmem [shape: f32[1,128], index: 5, kind: input, shape index: {}]
  %s6 = inlined_call_operand.hbm [shape: bf16[128,128], index: 6, kind: input, shape index: {}]
  %s7 = inlined_call_operand.vmem [shape: f32[1,128], index: 7, kind: input, shape index: {}]
  %s8 = inlined_call_operand.hbm [shape: f32[8,128], index: 8, kind: output, shape index: {}]
  %s9 = sld [smem:[#allocation0]]
  $region54: #{tpu_custom_call.1} parent=0
    _
  %s11 = ssub.s32 1, %s9
  %s12 = scalar_select 0, %s11, %s9
  %14 = dma.hbm_to_smem %s0, 16, [#allocation4], [#allocation3]
  %15 = dma.done [#allocation3], 16
  %16 = sfence
  $region1: #{tpu_custom_call.1} parent=0
    #allocation5 [shape = 'u8[12288]{0}', space=vmem, size = 0x3000, scoped, tag = 'input window, operand 1, single buffered']
    #allocation6 [shape = 's32[1]{0}', space=sflag, size = 0x4, scoped, tag = 'scoped memory for tpu_custom_call.1']
    #allocation7 [shape = 's32[1]{0}', space=sflag, size = 0x4, scoped, tag = 'scoped memory for tpu_custom_call.1']
    #allocation8 [shape = 'u8[32768]{0}', space=vmem, size = 0x8000, scoped, tag = 'input window, operand 2, single buffered']
    #allocation9 [shape = 's32[1]{0}', space=sflag, size = 0x4, scoped, tag = 'scoped memory for tpu_custom_call.1']
    #allocation10 [shape = 'u8[32768]{0}', space=vmem, size = 0x8000, scoped, tag = 'input window, operand 4, single buffered']
    #allocation11 [shape = 'u8[32768]{0}', space=vmem, size = 0x8000, scoped, tag = 'input window, operand 6, single buffered']
    #allocation12 [shape = 's32[1]{0}', space=sflag, size = 0x4, scoped, tag = 'scoped memory for tpu_custom_call.1']
    #allocation13 [shape = 'u8[4096]{0}', space=vmem, size = 0x1000, scoped, tag = 'output window, operand 0, single buffered']
    %17 = vsyncpa [#allocation6], 0
    %18 = vsyncpa [#allocation9], 0
    %19 = vsyncpa [#allocation12], 0
    %20 = vsyncpa [#allocation7], 0
    // Predicated region
    $region2: #{tpu_custom_call.1} parent=1 // pred_check
      _
    $region3: #{tpu_custom_call.1} parent=1 // pred_check_branch
      %22 = sbr.rel (0) target = $region5
    $region4: #{tpu_custom_call.1} parent=1 // pred_region
      %s24 = ssub.s32 384, 384
      %25 = vsyncadd [#allocation6], %s24
      %s26 = sshll.u32 [#allocation5], 4
      %s27 = int_to_ptr.vmem [resolvable:$true] %s26
      %32 = dma.hbm_to_vmem [thread:$0]  %s1, 384, %s27, [#allocation6], 128, 128, 8
    $region5: #{tpu_custom_call.1} parent=1 // pred_fallthru
      _
    // Predicated region
    $region6: #{tpu_custom_call.1} parent=1 // pred_check
      _
    $region7: #{tpu_custom_call.1} parent=1 // pred_check_branch
      %34 = sbr.rel (0) target = $region9
    $region8: #{tpu_custom_call.1} parent=1 // pred_region
      %s36 = ssub.s32 1024, 1024
      %37 = vsyncadd [#allocation9], %s36
      %s38 = sshll.u32 [#allocation8], 4
      %s39 = int_to_ptr.vmem [resolvable:$true] %s38
      %44 = dma.hbm_to_vmem [thread:$0]  %s2, 1024, %s39, [#allocation9], 64, 64, 4
    $region9: #{tpu_custom_call.1} parent=1 // pred_fallthru
      _
    // Predicated region
    $region10: #{tpu_custom_call.1} parent=1 // pred_check
      _
    $region11: #{tpu_custom_call.1} parent=1 // pred_check_branch
      %46 = sbr.rel (0) target = $region13
    $region12: #{tpu_custom_call.1} parent=1 // pred_region
      _
    $region13: #{tpu_custom_call.1} parent=1 // pred_fallthru
      _
    // Predicated region
    $region14: #{tpu_custom_call.1} parent=1 // pred_check
      _
    $region15: #{tpu_custom_call.1} parent=1 // pred_check_branch
      %48 = sbr.rel (0) target = $region17
    $region16: #{tpu_custom_call.1} parent=1 // pred_region
      %s50 = ssub.s32 1024, 1024
      %51 = vsyncadd [#allocation9], %s50
      %s52 = sshll.u32 [#allocation10], 4
      %s53 = int_to_ptr.vmem [resolvable:$true] %s52
      %58 = dma.hbm_to_vmem [thread:$0]  %s4, 1024, %s53, [#allocation9], 64, 64, 4
    $region17: #{tpu_custom_call.1} parent=1 // pred_fallthru
      _
    // Predicated region
    $region18: #{tpu_custom_call.1} parent=1 // pred_check
      _
    $region19: #{tpu_custom_call.1} parent=1 // pred_check_branch
      %60 = sbr.rel (0) target = $region21
    $region20: #{tpu_custom_call.1} parent=1 // pred_region
      _
    $region21: #{tpu_custom_call.1} parent=1 // pred_fallthru
      _
    // Predicated region
    $region22: #{tpu_custom_call.1} parent=1 // pred_check
      _
    $region23: #{tpu_custom_call.1} parent=1 // pred_check_branch
      %62 = sbr.rel (0) target = $region25
    $region24: #{tpu_custom_call.1} parent=1 // pred_region
      %s64 = ssub.s32 1024, 1024
      %65 = vsyncadd [#allocation12], %s64
      %s66 = sshll.u32 [#allocation11], 4
      %s67 = int_to_ptr.vmem [resolvable:$true] %s66
      %72 = dma.hbm_to_vmem [thread:$0]  %s6, 1024, %s67, [#allocation12], 64, 64, 4
    $region25: #{tpu_custom_call.1} parent=1 // pred_fallthru
      _
    // Predicated region
    $region26: #{tpu_custom_call.1} parent=1 // pred_check
      _
    $region27: #{tpu_custom_call.1} parent=1 // pred_check_branch
      %74 = sbr.rel (0) target = $region29
    $region28: #{tpu_custom_call.1} parent=1 // pred_region
      _
    $region29: #{tpu_custom_call.1} parent=1 // pred_fallthru
      _
    // Predicated region
    $region30: #{tpu_custom_call.1} parent=1 // pred_check
      _
    $region31: #{tpu_custom_call.1} parent=1 // pred_check_branch
      %76 = sbr.rel (0) target = $region33
    $region32: #{tpu_custom_call.1} parent=1 // pred_region
      %77 = dma.done [#allocation6], 384
    $region33: #{tpu_custom_call.1} parent=1 // pred_fallthru
      _
    // Predicated region
    $region34: #{tpu_custom_call.1} parent=1 // pred_check
      _
    $region35: #{tpu_custom_call.1} parent=1 // pred_check_branch
      %79 = sbr.rel (0) target = $region37
    $region36: #{tpu_custom_call.1} parent=1 // pred_region
      %80 = dma.done [#allocation9], 1024
    $region37: #{tpu_custom_call.1} parent=1 // pred_fallthru
      _
    // Predicated region
    $region38: #{tpu_custom_call.1} parent=1 // pred_check
      _
    $region39: #{tpu_custom_call.1} parent=1 // pred_check_branch
      %82 = sbr.rel (0) target = $region41
    $region40: #{tpu_custom_call.1} parent=1 // pred_region
      %83 = dma.done [#allocation9], 1024
    $region41: #{tpu_custom_call.1} parent=1 // pred_fallthru
      _
    // Predicated region
    $region42: #{tpu_custom_call.1} parent=1 // pred_check
      _
    $region43: #{tpu_custom_call.1} parent=1 // pred_check_branch
      %85 = sbr.rel (0) target = $region45
    $region44: #{tpu_custom_call.1} parent=1 // pred_region
      %86 = dma.done [#allocation12], 1024
    $region45: #{tpu_custom_call.1} parent=1 // pred_fallthru
      _
    %s88 = smul.u32 0, 64
    %s89 = sld [smem:[#allocation4 + %s88]]
    %s90 = scalar_lea.vmem [#allocation5], %s89
    %v91 = vld [vmem:[%s90] sm:$0x1]
    %v92 = vadd.f32 %v91, 0.0
    %s93 = sadd.s32 %s88, 1
    %s94 = sld [smem:[#allocation4 + %s93]]
    %s95 = scalar_lea.vmem [#allocation5], %s94
    %v96 = vld [vmem:[%s95] sm:$0x1]
    %v97 = vadd.f32 %v92, %v96
    %s98 = sadd.s32 %s88, 2
    %s99 = sld [smem:[#allocation4 + %s98]]
    %s100 = scalar_lea.vmem [#allocation5], %s99
    %v101 = vld [vmem:[%s100] sm:$0x1]
    %v102 = vadd.f32 %v97, %v101
    %s103 = sadd.s32 %s88, 3
    %s104 = sld [smem:[#allocation4 + %s103]]
    %s105 = scalar_lea.vmem [#allocation5], %s104
    %v106 = vld [vmem:[%s105] sm:$0x1]
    %v107 = vadd.f32 %v102, %v106
    %s108 = sadd.s32 %s88, 4
    %s109 = sld [smem:[#allocation4 + %s108]]
    %s110 = scalar_lea.vmem [#allocation5], %s109
    %v111 = vld [vmem:[%s110] sm:$0x1]
    %v112 = vadd.f32 %v107, %v111
    %s113 = sadd.s32 %s88, 5
    %s114 = sld [smem:[#allocation4 + %s113]]
    %s115 = scalar_lea.vmem [#allocation5], %s114
    %v116 = vld [vmem:[%s115] sm:$0x1]
    %v117 = vadd.f32 %v112, %v116
    %s118 = sadd.s32 %s88, 6
    %s119 = sld [smem:[#allocation4 + %s118]]
    %s120 = scalar_lea.vmem [#allocation5], %s119
    %v121 = vld [vmem:[%s120] sm:$0x1]
    %v122 = vadd.f32 %v117, %v121
    %s123 = sadd.s32 %s88, 7
    %s124 = sld [smem:[#allocation4 + %s123]]
    %s125 = scalar_lea.vmem [#allocation5], %s124
    %v126 = vld [vmem:[%s125] sm:$0x1]
    %v127 = vadd.f32 %v122, %v126
    %v128 = vmul.f32 %v127, 0.125
    %129 = vst [vmem:[#allocation2] sm:$0x1] %v128
    %s130 = sadd.s32 %s88, 8
    %s131 = sld [smem:[#allocation4 + %s130]]
    %s132 = scalar_lea.vmem [#allocation5], %s131
    %v133 = vld [vmem:[%s132] sm:$0x1]
    %v134 = vadd.f32 %v133, 0.0
    %s135 = sadd.s32 %s88, 9
    %s136 = sld [smem:[#allocation4 + %s135]]
    %s137 = scalar_lea.vmem [#allocation5], %s136
    %v138 = vld [vmem:[%s137] sm:$0x1]
    %v139 = vadd.f32 %v134, %v138
    %s140 = sadd.s32 %s88, 10
    %s141 = sld [smem:[#allocation4 + %s140]]
    %s142 = scalar_lea.vmem [#allocation5], %s141
    %v143 = vld [vmem:[%s142] sm:$0x1]
    %v144 = vadd.f32 %v139, %v143
    %s145 = sadd.s32 %s88, 11
    %s146 = sld [smem:[#allocation4 + %s145]]
    %s147 = scalar_lea.vmem [#allocation5], %s146
    %v148 = vld [vmem:[%s147] sm:$0x1]
    %v149 = vadd.f32 %v144, %v148
    %s150 = sadd.s32 %s88, 12
    %s151 = sld [smem:[#allocation4 + %s150]]
    %s152 = scalar_lea.vmem [#allocation5], %s151
    %v153 = vld [vmem:[%s152] sm:$0x1]
    %v154 = vadd.f32 %v149, %v153
    %s155 = sadd.s32 %s88, 13
    %s156 = sld [smem:[#allocation4 + %s155]]
    %s157 = scalar_lea.vmem [#allocation5], %s156
    %v158 = vld [vmem:[%s157] sm:$0x1]
    %v159 = vadd.f32 %v154, %v158
    %s160 = sadd.s32 %s88, 14
    %s161 = sld [smem:[#allocation4 + %s160]]
    %s162 = scalar_lea.vmem [#allocation5], %s161
    %v163 = vld [vmem:[%s162] sm:$0x1]
    %v164 = vadd.f32 %v159, %v163
    %s165 = sadd.s32 %s88, 15
    %s166 = sld [smem:[#allocation4 + %s165]]
    %s167 = scalar_lea.vmem [#allocation5], %s166
    %v168 = vld [vmem:[%s167] sm:$0x1]
    %v169 = vadd.f32 %v164, %v168
    %v170 = vmul.f32 %v169, 0.125
    %171 = vst [vmem:[#allocation2 + $0x1] sm:$0x1] %v170
    %s172 = sadd.s32 %s88, 16
    %s173 = sld [smem:[#allocation4 + %s172]]
    %s174 = scalar_lea.vmem [#allocation5], %s173
    %v175 = vld [vmem:[%s174] sm:$0x1]
    %v176 = vadd.f32 %v175, 0.0
    %s177 = sadd.s32 %s88, 17
    %s178 = sld [smem:[#allocation4 + %s177]]
    %s179 = scalar_lea.vmem [#allocation5], %s178
    %v180 = vld [vmem:[%s179] sm:$0x1]
    %v181 = vadd.f32 %v176, %v180
    %s182 = sadd.s32 %s88, 18
    %s183 = sld [smem:[#allocation4 + %s182]]
    %s184 = scalar_lea.vmem [#allocation5], %s183
    %v185 = vld [vmem:[%s184] sm:$0x1]
    %v186 = vadd.f32 %v181, %v185
    %s187 = sadd.s32 %s88, 19
    %s188 = sld [smem:[#allocation4 + %s187]]
    %s189 = scalar_lea.vmem [#allocation5], %s188
    %v190 = vld [vmem:[%s189] sm:$0x1]
    %v191 = vadd.f32 %v186, %v190
    %s192 = sadd.s32 %s88, 20
    %s193 = sld [smem:[#allocation4 + %s192]]
    %s194 = scalar_lea.vmem [#allocation5], %s193
    %v195 = vld [vmem:[%s194] sm:$0x1]
    %v196 = vadd.f32 %v191, %v195
    %s197 = sadd.s32 %s88, 21
    %s198 = sld [smem:[#allocation4 + %s197]]
    %s199 = scalar_lea.vmem [#allocation5], %s198
    %v200 = vld [vmem:[%s199] sm:$0x1]
    %v201 = vadd.f32 %v196, %v200
    %s202 = sadd.s32 %s88, 22
    %s203 = sld [smem:[#allocation4 + %s202]]
    %s204 = scalar_lea.vmem [#allocation5], %s203
    %v205 = vld [vmem:[%s204] sm:$0x1]
    %v206 = vadd.f32 %v201, %v205
    %s207 = sadd.s32 %s88, 23
    %s208 = sld [smem:[#allocation4 + %s207]]
    %s209 = scalar_lea.vmem [#allocation5], %s208
    %v210 = vld [vmem:[%s209] sm:$0x1]
    %v211 = vadd.f32 %v206, %v210
    %v212 = vmul.f32 %v211, 0.125
    %213 = vst [vmem:[#allocation2 + $0x2] sm:$0x1] %v212
    %s214 = sadd.s32 %s88, 24
    %s215 = sld [smem:[#allocation4 + %s214]]
    %s216 = scalar_lea.vmem [#allocation5], %s215
    %v217 = vld [vmem:[%s216] sm:$0x1]
    %v218 = vadd.f32 %v217, 0.0
    %s219 = sadd.s32 %s88, 25
    %s220 = sld [smem:[#allocation4 + %s219]]
    %s221 = scalar_lea.vmem [#allocation5], %s220
    %v222 = vld [vmem:[%s221] sm:$0x1]
    %v223 = vadd.f32 %v218, %v222
    %s224 = sadd.s32 %s88, 26
    %s225 = sld [smem:[#allocation4 + %s224]]
    %s226 = scalar_lea.vmem [#allocation5], %s225
    %v227 = vld [vmem:[%s226] sm:$0x1]
    %v228 = vadd.f32 %v223, %v227
    %s229 = sadd.s32 %s88, 27
    %s230 = sld [smem:[#allocation4 + %s229]]
    %s231 = scalar_lea.vmem [#allocation5], %s230
    %v232 = vld [vmem:[%s231] sm:$0x1]
    %v233 = vadd.f32 %v228, %v232
    %s234 = sadd.s32 %s88, 28
    %s235 = sld [smem:[#allocation4 + %s234]]
    %s236 = scalar_lea.vmem [#allocation5], %s235
    %v237 = vld [vmem:[%s236] sm:$0x1]
    %v238 = vadd.f32 %v233, %v237
    %s239 = sadd.s32 %s88, 29
    %s240 = sld [smem:[#allocation4 + %s239]]
    %s241 = scalar_lea.vmem [#allocation5], %s240
    %v242 = vld [vmem:[%s241] sm:$0x1]
    %v243 = vadd.f32 %v238, %v242
    %s244 = sadd.s32 %s88, 30
    %s245 = sld [smem:[#allocation4 + %s244]]
    %s246 = scalar_lea.vmem [#allocation5], %s245
    %v247 = vld [vmem:[%s246] sm:$0x1]
    %v248 = vadd.f32 %v243, %v247
    %s249 = sadd.s32 %s88, 31
    %s250 = sld [smem:[#allocation4 + %s249]]
    %s251 = scalar_lea.vmem [#allocation5], %s250
    %v252 = vld [vmem:[%s251] sm:$0x1]
    %v253 = vadd.f32 %v248, %v252
    %v254 = vmul.f32 %v253, 0.125
    %255 = vst [vmem:[#allocation2 + $0x3] sm:$0x1] %v254
    %s256 = sadd.s32 %s88, 32
    %s257 = sld [smem:[#allocation4 + %s256]]
    %s258 = scalar_lea.vmem [#allocation5], %s257
    %v259 = vld [vmem:[%s258] sm:$0x1]
    %v260 = vadd.f32 %v259, 0.0
    %s261 = sadd.s32 %s88, 33
    %s262 = sld [smem:[#allocation4 + %s261]]
    %s263 = scalar_lea.vmem [#allocation5], %s262
    %v264 = vld [vmem:[%s263] sm:$0x1]
    %v265 = vadd.f32 %v260, %v264
    %s266 = sadd.s32 %s88, 34
    %s267 = sld [smem:[#allocation4 + %s266]]
    %s268 = scalar_lea.vmem [#allocation5], %s267
    %v269 = vld [vmem:[%s268] sm:$0x1]
    %v270 = vadd.f32 %v265, %v269
    %s271 = sadd.s32 %s88, 35
    %s272 = sld [smem:[#allocation4 + %s271]]
    %s273 = scalar_lea.vmem [#allocation5], %s272
    %v274 = vld [vmem:[%s273] sm:$0x1]
    %v275 = vadd.f32 %v270, %v274
    %s276 = sadd.s32 %s88, 36
    %s277 = sld [smem:[#allocation4 + %s276]]
    %s278 = scalar_lea.vmem [#allocation5], %s277
    %v279 = vld [vmem:[%s278] sm:$0x1]
    %v280 = vadd.f32 %v275, %v279
    %s281 = sadd.s32 %s88, 37
    %s282 = sld [smem:[#allocation4 + %s281]]
    %s283 = scalar_lea.vmem [#allocation5], %s282
    %v284 = vld [vmem:[%s283] sm:$0x1]
    %v285 = vadd.f32 %v280, %v284
    %s286 = sadd.s32 %s88, 38
    %s287 = sld [smem:[#allocation4 + %s286]]
    %s288 = scalar_lea.vmem [#allocation5], %s287
    %v289 = vld [vmem:[%s288] sm:$0x1]
    %v290 = vadd.f32 %v285, %v289
    %s291 = sadd.s32 %s88, 39
    %s292 = sld [smem:[#allocation4 + %s291]]
    %s293 = scalar_lea.vmem [#allocation5], %s292
    %v294 = vld [vmem:[%s293] sm:$0x1]
    %v295 = vadd.f32 %v290, %v294
    %v296 = vmul.f32 %v295, 0.125
    %297 = vst [vmem:[#allocation2 + $0x4] sm:$0x1] %v296
    %s298 = sadd.s32 %s88, 40
    %s299 = sld [smem:[#allocation4 + %s298]]
    %s300 = scalar_lea.vmem [#allocation5], %s299
    %v301 = vld [vmem:[%s300] sm:$0x1]
    %v302 = vadd.f32 %v301, 0.0
    %s303 = sadd.s32 %s88, 41
    %s304 = sld [smem:[#allocation4 + %s303]]
    %s305 = scalar_lea.vmem [#allocation5], %s304
    %v306 = vld [vmem:[%s305] sm:$0x1]
    %v307 = vadd.f32 %v302, %v306
    %s308 = sadd.s32 %s88, 42
    %s309 = sld [smem:[#allocation4 + %s308]]
    %s310 = scalar_lea.vmem [#allocation5], %s309
    %v311 = vld [vmem:[%s310] sm:$0x1]
    %v312 = vadd.f32 %v307, %v311
    %s313 = sadd.s32 %s88, 43
    %s314 = sld [smem:[#allocation4 + %s313]]
    %s315 = scalar_lea.vmem [#allocation5], %s314
    %v316 = vld [vmem:[%s315] sm:$0x1]
    %v317 = vadd.f32 %v312, %v316
    %s318 = sadd.s32 %s88, 44
    %s319 = sld [smem:[#allocation4 + %s318]]
    %s320 = scalar_lea.vmem [#allocation5], %s319
    %v321 = vld [vmem:[%s320] sm:$0x1]
    %v322 = vadd.f32 %v317, %v321
    %s323 = sadd.s32 %s88, 45
    %s324 = sld [smem:[#allocation4 + %s323]]
    %s325 = scalar_lea.vmem [#allocation5], %s324
    %v326 = vld [vmem:[%s325] sm:$0x1]
    %v327 = vadd.f32 %v322, %v326
    %s328 = sadd.s32 %s88, 46
    %s329 = sld [smem:[#allocation4 + %s328]]
    %s330 = scalar_lea.vmem [#allocation5], %s329
    %v331 = vld [vmem:[%s330] sm:$0x1]
    %v332 = vadd.f32 %v327, %v331
    %s333 = sadd.s32 %s88, 47
    %s334 = sld [smem:[#allocation4 + %s333]]
    %s335 = scalar_lea.vmem [#allocation5], %s334
    %v336 = vld [vmem:[%s335] sm:$0x1]
    %v337 = vadd.f32 %v332, %v336
    %v338 = vmul.f32 %v337, 0.125
    %339 = vst [vmem:[#allocation2 + $0x5] sm:$0x1] %v338
    %s340 = sadd.s32 %s88, 48
    %s341 = sld [smem:[#allocation4 + %s340]]
    %s342 = scalar_lea.vmem [#allocation5], %s341
    %v343 = vld [vmem:[%s342] sm:$0x1]
    %v344 = vadd.f32 %v343, 0.0
    %s345 = sadd.s32 %s88, 49
    %s346 = sld [smem:[#allocation4 + %s345]]
    %s347 = scalar_lea.vmem [#allocation5], %s346
    %v348 = vld [vmem:[%s347] sm:$0x1]
    %v349 = vadd.f32 %v344, %v348
    %s350 = sadd.s32 %s88, 50
    %s351 = sld [smem:[#allocation4 + %s350]]
    %s352 = scalar_lea.vmem [#allocation5], %s351
    %v353 = vld [vmem:[%s352] sm:$0x1]
    %v354 = vadd.f32 %v349, %v353
    %s355 = sadd.s32 %s88, 51
    %s356 = sld [smem:[#allocation4 + %s355]]
    %s357 = scalar_lea.vmem [#allocation5], %s356
    %v358 = vld [vmem:[%s357] sm:$0x1]
    %v359 = vadd.f32 %v354, %v358
    %s360 = sadd.s32 %s88, 52
    %s361 = sld [smem:[#allocation4 + %s360]]
    %s362 = scalar_lea.vmem [#allocation5], %s361
    %v363 = vld [vmem:[%s362] sm:$0x1]
    %v364 = vadd.f32 %v359, %v363
    %s365 = sadd.s32 %s88, 53
    %s366 = sld [smem:[#allocation4 + %s365]]
    %s367 = scalar_lea.vmem [#allocation5], %s366
    %v368 = vld [vmem:[%s367] sm:$0x1]
    %v369 = vadd.f32 %v364, %v368
    %s370 = sadd.s32 %s88, 54
    %s371 = sld [smem:[#allocation4 + %s370]]
    %s372 = scalar_lea.vmem [#allocation5], %s371
    %v373 = vld [vmem:[%s372] sm:$0x1]
    %v374 = vadd.f32 %v369, %v373
    %s375 = sadd.s32 %s88, 55
    %s376 = sld [smem:[#allocation4 + %s375]]
    %s377 = scalar_lea.vmem [#allocation5], %s376
    %v378 = vld [vmem:[%s377] sm:$0x1]
    %v379 = vadd.f32 %v374, %v378
    %v380 = vmul.f32 %v379, 0.125
    %381 = vst [vmem:[#allocation2 + $0x6] sm:$0x1] %v380
    %s382 = sadd.s32 %s88, 56
    %s383 = sld [smem:[#allocation4 + %s382]]
    %s384 = scalar_lea.vmem [#allocation5], %s383
    %v385 = vld [vmem:[%s384] sm:$0x1]
    %v386 = vadd.f32 %v385, 0.0
    %s387 = sadd.s32 %s88, 57
    %s388 = sld [smem:[#allocation4 + %s387]]
    %s389 = scalar_lea.vmem [#allocation5], %s388
    %v390 = vld [vmem:[%s389] sm:$0x1]
    %v391 = vadd.f32 %v386, %v390
    %s392 = sadd.s32 %s88, 58
    %s393 = sld [smem:[#allocation4 + %s392]]
    %s394 = scalar_lea.vmem [#allocation5], %s393
    %v395 = vld [vmem:[%s394] sm:$0x1]
    %v396 = vadd.f32 %v391, %v395
    %s397 = sadd.s32 %s88, 59
    %s398 = sld [smem:[#allocation4 + %s397]]
    %s399 = scalar_lea.vmem [#allocation5], %s398
    %v400 = vld [vmem:[%s399] sm:$0x1]
    %v401 = vadd.f32 %v396, %v400
    %s402 = sadd.s32 %s88, 60
    %s403 = sld [smem:[#allocation4 + %s402]]
    %s404 = scalar_lea.vmem [#allocation5], %s403
    %v405 = vld [vmem:[%s404] sm:$0x1]
    %v406 = vadd.f32 %v401, %v405
    %s407 = sadd.s32 %s88, 61
    %s408 = sld [smem:[#allocation4 + %s407]]
    %s409 = scalar_lea.vmem [#allocation5], %s408
    %v410 = vld [vmem:[%s409] sm:$0x1]
    %v411 = vadd.f32 %v406, %v410
    %s412 = sadd.s32 %s88, 62
    %s413 = sld [smem:[#allocation4 + %s412]]
    %s414 = scalar_lea.vmem [#allocation5], %s413
    %v415 = vld [vmem:[%s414] sm:$0x1]
    %v416 = vadd.f32 %v411, %v415
    %s417 = sadd.s32 %s88, 63
    %s418 = sld [smem:[#allocation4 + %s417]]
    %s419 = scalar_lea.vmem [#allocation5], %s418
    %v420 = vld [vmem:[%s419] sm:$0x1]
    %v421 = vadd.f32 %v416, %v420
    %v422 = vmul.f32 %v421, 0.125
    %423 = vst [vmem:[#allocation2 + $0x7] sm:$0x1] %v422
    %v424 = vld [vmem:[#allocation2] sm:$0xff]
    %v425 = vpack.c.bf16 %v424, %v424
    %v426 = vld [vmem:[#allocation8] sm:$0xf]
    %v427 = vld [vmem:[#allocation8 + $0x4] sm:$0xf]
    %v428 = vld [vmem:[#allocation8 + $0x8] sm:$0xf]
    %v429 = vld [vmem:[#allocation8 + $0xc] sm:$0xf]
    %v430 = vld [vmem:[#allocation8 + $0x10] sm:$0xf]
    %v431 = vld [vmem:[#allocation8 + $0x14] sm:$0xf]
    %v432 = vld [vmem:[#allocation8 + $0x18] sm:$0xf]
    %v433 = vld [vmem:[#allocation8 + $0x1c] sm:$0xf]
    %v434 = vld [vmem:[#allocation8 + $0x20] sm:$0xf]
    %v435 = vld [vmem:[#allocation8 + $0x24] sm:$0xf]
    %v436 = vld [vmem:[#allocation8 + $0x28] sm:$0xf]
    %v437 = vld [vmem:[#allocation8 + $0x2c] sm:$0xf]
    %v438 = vld [vmem:[#allocation8 + $0x30] sm:$0xf]
    %v439 = vld [vmem:[#allocation8 + $0x34] sm:$0xf]
    %v440 = vld [vmem:[#allocation8 + $0x38] sm:$0xf]
    %v441 = vld [vmem:[#allocation8 + $0x3c] sm:$0xf]
    %v442 = vld [vmem:[%s3] sm:$0x1]
    %v444 = vlaneseq
    %v445 = vshrl.u32 %v444, 7
    %v446 = vsub.s32 0, %v445
    %v447 = vrot.slane %v442, %v446
    %v465 = vunpack.c.l.b16 %v426
    %v466 = vunpack.c.l.b16 %v427
    %v467 = vunpack.c.l.b16 %v428
    %v468 = vunpack.c.l.b16 %v429
    %v469 = vunpack.c.l.b16 %v430
    %v470 = vunpack.c.l.b16 %v431
    %v471 = vunpack.c.l.b16 %v432
    %v472 = vunpack.c.l.b16 %v433
    %v473 = vunpack.c.l.b16 %v434
    %v474 = vunpack.c.l.b16 %v435
    %v475 = vunpack.c.l.b16 %v436
    %v476 = vunpack.c.l.b16 %v437
    %v477 = vunpack.c.l.b16 %v438
    %v478 = vunpack.c.l.b16 %v439
    %v479 = vunpack.c.l.b16 %v440
    %v480 = vunpack.c.l.b16 %v441
    %v481 = vpack.c.b16 %v466, %v465
    %v482 = vpack.c.b16 %v468, %v467
    %v483 = vpack.c.b16 %v470, %v469
    %v484 = vpack.c.b16 %v472, %v471
    %v485 = vpack.c.b16 %v474, %v473
    %v486 = vpack.c.b16 %v476, %v475
    %v487 = vpack.c.b16 %v478, %v477
    %v488 = vpack.c.b16 %v480, %v479
    %497 = vmatprep.subr.bf16.mxu0 0
    %498 = vmatpush1.bf16.msra.mxu0 %v481
    %499 = vmatprep.subr.bf16.mxu0 0
    %500 = vmatpush1.bf16.msra.mxu0 %v482
    %501 = vmatprep.subr.bf16.mxu0 0
    %502 = vmatpush1.bf16.msra.mxu0 %v483
    %503 = vmatprep.subr.bf16.mxu0 0
    %504 = vmatpush1.bf16.msra.mxu0 %v484
    %505 = vmatprep.subr.bf16.mxu0 0
    %506 = vmatpush1.bf16.msra.mxu0 %v485
    %507 = vmatprep.subr.bf16.mxu0 0
    %508 = vmatpush1.bf16.msra.mxu0 %v486
    %509 = vmatprep.subr.bf16.mxu0 0
    %510 = vmatpush1.bf16.msra.mxu0 %v487
    %511 = vmatprep.subr.bf16.mxu0 0
    %512 = vmatpush1.bf16.msra.mxu0 %v488
    %513 = vmatprep.subr.bf16.mxu0 0
    %514 = vmatpush1.bf16.msra.mxu0 0
    %515 = vmatprep.subr.bf16.mxu0 0
    %516 = vmatpush1.bf16.msra.mxu0 0
    %517 = vmatprep.subr.bf16.mxu0 0
    %518 = vmatpush1.bf16.msra.mxu0 0
    %519 = vmatprep.subr.bf16.mxu0 0
    %520 = vmatpush1.bf16.msra.mxu0 0
    %521 = vmatprep.subr.bf16.mxu0 0
    %522 = vmatpush1.bf16.msra.mxu0 0
    %523 = vmatprep.subr.bf16.mxu0 0
    %524 = vmatpush1.bf16.msra.mxu0 0
    %525 = vmatprep.subr.bf16.mxu0 0
    %526 = vmatpush1.bf16.msra.mxu0 0
    %527 = vmatprep.subr.bf16.mxu0 0
    %528 = vmatpush1.bf16.msra.mxu0 0
    %529 = vmatprep.mubr.bf16.mxu0 0
    %530 = vmatmul.mubr.bf16.gmra.mrb[0].mxu0 %v425
    %v531 = vpop.f32.mrb[0].mxu0
    %v532 = vadd.f32 %v447, %v531
    %v533 = vpop.f32.mrb[0].mxu0
    %v534 = vpop.f32.mrb[0].mxu0
    %v535 = vpop.f32.mrb[0].mxu0
    %536 = vdwg.mxu0
    %v537 = vmax.f32 %v532, 0.0
    %v538 = vpack.c.bf16 %v537, %v537
    %v539 = vld [vmem:[#allocation10] sm:$0xf]
    %v540 = vld [vmem:[#allocation10 + $0x4] sm:$0xf]
    %v541 = vld [vmem:[#allocation10 + $0x8] sm:$0xf]
    %v542 = vld [vmem:[#allocation10 + $0xc] sm:$0xf]
    %v543 = vld [vmem:[#allocation10 + $0x10] sm:$0xf]
    %v544 = vld [vmem:[#allocation10 + $0x14] sm:$0xf]
    %v545 = vld [vmem:[#allocation10 + $0x18] sm:$0xf]
    %v546 = vld [vmem:[#allocation10 + $0x1c] sm:$0xf]
    %v547 = vld [vmem:[#allocation10 + $0x20] sm:$0xf]
    %v548 = vld [vmem:[#allocation10 + $0x24] sm:$0xf]
    %v549 = vld [vmem:[#allocation10 + $0x28] sm:$0xf]
    %v550 = vld [vmem:[#allocation10 + $0x2c] sm:$0xf]
    %v551 = vld [vmem:[#allocation10 + $0x30] sm:$0xf]
    %v552 = vld [vmem:[#allocation10 + $0x34] sm:$0xf]
    %v553 = vld [vmem:[#allocation10 + $0x38] sm:$0xf]
    %v554 = vld [vmem:[#allocation10 + $0x3c] sm:$0xf]
    %v555 = vld [vmem:[%s5] sm:$0x1]
    %v557 = vlaneseq
    %v558 = vshrl.u32 %v557, 7
    %v559 = vsub.s32 0, %v558
    %v560 = vrot.slane %v555, %v559
    %v578 = vunpack.c.l.b16 %v539
    %v579 = vunpack.c.l.b16 %v540
    %v580 = vunpack.c.l.b16 %v541
    %v581 = vunpack.c.l.b16 %v542
    %v582 = vunpack.c.l.b16 %v543
    %v583 = vunpack.c.l.b16 %v544
    %v584 = vunpack.c.l.b16 %v545
    %v585 = vunpack.c.l.b16 %v546
    %v586 = vunpack.c.l.b16 %v547
    %v587 = vunpack.c.l.b16 %v548
    %v588 = vunpack.c.l.b16 %v549
    %v589 = vunpack.c.l.b16 %v550
    %v590 = vunpack.c.l.b16 %v551
    %v591 = vunpack.c.l.b16 %v552
    %v592 = vunpack.c.l.b16 %v553
    %v593 = vunpack.c.l.b16 %v554
    %v594 = vpack.c.b16 %v579, %v578
    %v595 = vpack.c.b16 %v581, %v580
    %v596 = vpack.c.b16 %v583, %v582
    %v597 = vpack.c.b16 %v585, %v584
    %v598 = vpack.c.b16 %v587, %v586
    %v599 = vpack.c.b16 %v589, %v588
    %v600 = vpack.c.b16 %v591, %v590
    %v601 = vpack.c.b16 %v593, %v592
    %610 = vmatprep.subr.bf16.mxu0 0
    %611 = vmatpush1.bf16.msra.mxu0 %v594
    %612 = vmatprep.subr.bf16.mxu0 0
    %613 = vmatpush1.bf16.msra.mxu0 %v595
    %614 = vmatprep.subr.bf16.mxu0 0
    %615 = vmatpush1.bf16.msra.mxu0 %v596
    %616 = vmatprep.subr.bf16.mxu0 0
    %617 = vmatpush1.bf16.msra.mxu0 %v597
    %618 = vmatprep.subr.bf16.mxu0 0
    %619 = vmatpush1.bf16.msra.mxu0 %v598
    %620 = vmatprep.subr.bf16.mxu0 0
    %621 = vmatpush1.bf16.msra.mxu0 %v599
    %622 = vmatprep.subr.bf16.mxu0 0
    %623 = vmatpush1.bf16.msra.mxu0 %v600
    %624 = vmatprep.subr.bf16.mxu0 0
    %625 = vmatpush1.bf16.msra.mxu0 %v601
    %626 = vmatprep.subr.bf16.mxu0 0
    %627 = vmatpush1.bf16.msra.mxu0 0
    %628 = vmatprep.subr.bf16.mxu0 0
    %629 = vmatpush1.bf16.msra.mxu0 0
    %630 = vmatprep.subr.bf16.mxu0 0
    %631 = vmatpush1.bf16.msra.mxu0 0
    %632 = vmatprep.subr.bf16.mxu0 0
    %633 = vmatpush1.bf16.msra.mxu0 0
    %634 = vmatprep.subr.bf16.mxu0 0
    %635 = vmatpush1.bf16.msra.mxu0 0
    %636 = vmatprep.subr.bf16.mxu0 0
    %637 = vmatpush1.bf16.msra.mxu0 0
    %638 = vmatprep.subr.bf16.mxu0 0
    %639 = vmatpush1.bf16.msra.mxu0 0
    %640 = vmatprep.subr.bf16.mxu0 0
    %641 = vmatpush1.bf16.msra.mxu0 0
    %642 = vmatprep.mubr.bf16.mxu0 0
    %643 = vmatmul.mubr.bf16.gmra.mrb[0].mxu0 %v538
    %v644 = vpop.f32.mrb[0].mxu0
    %v645 = vadd.f32 %v560, %v644
    %v646 = vpop.f32.mrb[0].mxu0
    %v647 = vpop.f32.mrb[0].mxu0
    %v648 = vpop.f32.mrb[0].mxu0
    %649 = vdwg.mxu0
    %v650 = vlaneseq
    %v651 = vand.u32 %v650, 127
    %vm652 = vcmp.lt.s32.totalorder %v651, 4
    %v653 = vsel %vm652, %v645, -1e+30
    %654 = vmax.xlane.f32.xlu0 %v653
    %v655 = vpop.xlane.xlu0 %654
    %v656 = vsub.f32 %v653, %v655
    %v657 = vmul.f32 %v656, 1.442695
    %v658 = vpow.pop %v657
    %659 = vadd.xlane.f32.xlu0 %v658
    %v660 = vpop.xlane.xlu0 %659
    %v661 = vrcp.pop %v660
    %v662 = vmul.f32 %v658, %v661
    %v663 = vlaneseq
    %v664 = vshrl.u32 %v663, 7
    %v665 = vadd.s32 %v664, 8
    %v666 = vadd.s32 %v664, 16
    %v667 = vadd.s32 %v664, 24
    %v668 = vadd.s32 %v664, 32
    %v669 = vadd.s32 %v664, 40
    %v670 = vadd.s32 %v664, 48
    %v671 = vadd.s32 %v664, 56
    %v672 = vadd.s32 %v664, 64
    %v673 = vadd.s32 %v664, 72
    %v674 = vadd.s32 %v664, 80
    %v675 = vadd.s32 %v664, 88
    %v676 = vadd.s32 %v664, 96
    %v677 = vadd.s32 %v664, 104
    %v678 = vadd.s32 %v664, 112
    %v679 = vadd.s32 %v664, 120
    %v680 = vmul.u32 %v664, 8
    %v681 = vmul.u32 %v665, 8
    %v682 = vmul.u32 %v666, 8
    %v683 = vmul.u32 %v667, 8
    %v684 = vmul.u32 %v668, 8
    %v685 = vmul.u32 %v669, 8
    %v686 = vmul.u32 %v670, 8
    %v687 = vmul.u32 %v671, 8
    %v688 = vmul.u32 %v672, 8
    %v689 = vmul.u32 %v673, 8
    %v690 = vmul.u32 %v674, 8
    %v691 = vmul.u32 %v675, 8
    %v692 = vmul.u32 %v676, 8
    %v693 = vmul.u32 %v677, 8
    %v694 = vmul.u32 %v678, 8
    %v695 = vmul.u32 %v679, 8
    %vm696 = vcmp.ge.s32.totalorder %v651, %v680
    %vm697 = vcmp.ge.s32.totalorder %v651, %v681
    %vm698 = vcmp.ge.s32.totalorder %v651, %v682
    %vm699 = vcmp.ge.s32.totalorder %v651, %v683
    %vm700 = vcmp.ge.s32.totalorder %v651, %v684
    %vm701 = vcmp.ge.s32.totalorder %v651, %v685
    %vm702 = vcmp.ge.s32.totalorder %v651, %v686
    %vm703 = vcmp.ge.s32.totalorder %v651, %v687
    %vm704 = vcmp.ge.s32.totalorder %v651, %v688
    %vm705 = vcmp.ge.s32.totalorder %v651, %v689
    %vm706 = vcmp.ge.s32.totalorder %v651, %v690
    %vm707 = vcmp.ge.s32.totalorder %v651, %v691
    %vm708 = vcmp.ge.s32.totalorder %v651, %v692
    %vm709 = vcmp.ge.s32.totalorder %v651, %v693
    %vm710 = vcmp.ge.s32.totalorder %v651, %v694
    %vm711 = vcmp.ge.s32.totalorder %v651, %v695
    %v712 = vadd.s32 %v680, 8
    %v713 = vadd.s32 %v681, 8
    %v714 = vadd.s32 %v682, 8
    %v715 = vadd.s32 %v683, 8
    %v716 = vadd.s32 %v684, 8
    %v717 = vadd.s32 %v685, 8
    %v718 = vadd.s32 %v686, 8
    %v719 = vadd.s32 %v687, 8
    %v720 = vadd.s32 %v688, 8
    %v721 = vadd.s32 %v689, 8
    %v722 = vadd.s32 %v690, 8
    %v723 = vadd.s32 %v691, 8
    %v724 = vadd.s32 %v692, 8
    %v725 = vadd.s32 %v693, 8
    %v726 = vadd.s32 %v694, 8
    %v727 = vadd.s32 %v695, 8
    %vm728 = vcmp.lt.s32.totalorder %v651, %v712
    %vm729 = vcmp.lt.s32.totalorder %v651, %v713
    %vm730 = vcmp.lt.s32.totalorder %v651, %v714
    %vm731 = vcmp.lt.s32.totalorder %v651, %v715
    %vm732 = vcmp.lt.s32.totalorder %v651, %v716
    %vm733 = vcmp.lt.s32.totalorder %v651, %v717
    %vm734 = vcmp.lt.s32.totalorder %v651, %v718
    %vm735 = vcmp.lt.s32.totalorder %v651, %v719
    %vm736 = vcmp.lt.s32.totalorder %v651, %v720
    %vm737 = vcmp.lt.s32.totalorder %v651, %v721
    %vm738 = vcmp.lt.s32.totalorder %v651, %v722
    %vm739 = vcmp.lt.s32.totalorder %v651, %v723
    %vm740 = vcmp.lt.s32.totalorder %v651, %v724
    %vm741 = vcmp.lt.s32.totalorder %v651, %v725
    %vm742 = vcmp.lt.s32.totalorder %v651, %v726
    %vm743 = vcmp.lt.s32.totalorder %v651, %v727
    %vm744 = vmand %vm696, %vm728
    %vm745 = vmand %vm697, %vm729
    %vm746 = vmand %vm698, %vm730
    %vm747 = vmand %vm699, %vm731
    %vm748 = vmand %vm700, %vm732
    %vm749 = vmand %vm701, %vm733
    %vm750 = vmand %vm702, %vm734
    %vm751 = vmand %vm703, %vm735
    %vm752 = vmand %vm704, %vm736
    %vm753 = vmand %vm705, %vm737
    %vm754 = vmand %vm706, %vm738
    %vm755 = vmand %vm707, %vm739
    %vm756 = vmand %vm708, %vm740
    %vm757 = vmand %vm709, %vm741
    %vm758 = vmand %vm710, %vm742
    %vm759 = vmand %vm711, %vm743
    %v760 = vsel %vm744, 1.0, 0.0
    %v761 = vsel %vm745, 1.0, 0.0
    %v762 = vsel %vm746, 1.0, 0.0
    %v763 = vsel %vm747, 1.0, 0.0
    %v764 = vsel %vm748, 1.0, 0.0
    %v765 = vsel %vm749, 1.0, 0.0
    %v766 = vsel %vm750, 1.0, 0.0
    %v767 = vsel %vm751, 1.0, 0.0
    %v768 = vsel %vm752, 1.0, 0.0
    %v769 = vsel %vm753, 1.0, 0.0
    %v770 = vsel %vm754, 1.0, 0.0
    %v771 = vsel %vm755, 1.0, 0.0
    %v772 = vsel %vm756, 1.0, 0.0
    %v773 = vsel %vm757, 1.0, 0.0
    %v774 = vsel %vm758, 1.0, 0.0
    %v775 = vsel %vm759, 1.0, 0.0
    %v776 = vpack.c.bf16 %v761, %v760
    %v777 = vpack.c.bf16 %v763, %v762
    %v778 = vpack.c.bf16 %v765, %v764
    %v779 = vpack.c.bf16 %v767, %v766
    %v780 = vpack.c.bf16 %v769, %v768
    %v781 = vpack.c.bf16 %v771, %v770
    %v782 = vpack.c.bf16 %v773, %v772
    %v783 = vpack.c.bf16 %v775, %v774
    %v784 = vpack.c.bf16 %v662, %v662
    %785 = vmatprep.subr.bf16.mxu0 0
    %786 = vmatpush1.bf16.msra.mxu0 %v776
    %787 = vmatprep.subr.bf16.mxu0 0
    %788 = vmatpush1.bf16.msra.mxu0 %v777
    %789 = vmatprep.subr.bf16.mxu0 0
    %790 = vmatpush1.bf16.msra.mxu0 %v778
    %791 = vmatprep.subr.bf16.mxu0 0
    %792 = vmatpush1.bf16.msra.mxu0 %v779
    %793 = vmatprep.subr.bf16.mxu0 0
    %794 = vmatpush1.bf16.msra.mxu0 %v780
    %795 = vmatprep.subr.bf16.mxu0 0
    %796 = vmatpush1.bf16.msra.mxu0 %v781
    %797 = vmatprep.subr.bf16.mxu0 0
    %798 = vmatpush1.bf16.msra.mxu0 %v782
    %799 = vmatprep.subr.bf16.mxu0 0
    %800 = vmatpush1.bf16.msra.mxu0 %v783
    %801 = vmatprep.subr.bf16.mxu0 0
    %802 = vmatpush1.bf16.msra.mxu0 0
    %803 = vmatprep.subr.bf16.mxu0 0
    %804 = vmatpush1.bf16.msra.mxu0 0
    %805 = vmatprep.subr.bf16.mxu0 0
    %806 = vmatpush1.bf16.msra.mxu0 0
    %807 = vmatprep.subr.bf16.mxu0 0
    %808 = vmatpush1.bf16.msra.mxu0 0
    %809 = vmatprep.subr.bf16.mxu0 0
    %810 = vmatpush1.bf16.msra.mxu0 0
    %811 = vmatprep.subr.bf16.mxu0 0
    %812 = vmatpush1.bf16.msra.mxu0 0
    %813 = vmatprep.subr.bf16.mxu0 0
    %814 = vmatpush1.bf16.msra.mxu0 0
    %815 = vmatprep.subr.bf16.mxu0 0
    %816 = vmatpush1.bf16.msra.mxu0 0
    %817 = vmatprep.mubr.bf16.mxu0 0
    %818 = vmatmul.mubr.bf16.gmra.mrb[0].mxu0 %v784
    %v819 = vpop.f32.mrb[0].mxu0
    %v820 = vadd.f32 0.0, %v819
    %v821 = vpop.f32.mrb[0].mxu0
    %v822 = vpop.f32.mrb[0].mxu0
    %v823 = vpop.f32.mrb[0].mxu0
    %824 = vdwg.mxu0
    %v825 = vmul.f32 %v537, %v820
    %v826 = vpack.c.bf16 %v825, %v825
    %v827 = vld [vmem:[#allocation11] sm:$0xf]
    %v828 = vld [vmem:[#allocation11 + $0x4] sm:$0xf]
    %v829 = vld [vmem:[#allocation11 + $0x8] sm:$0xf]
    %v830 = vld [vmem:[#allocation11 + $0xc] sm:$0xf]
    %v831 = vld [vmem:[#allocation11 + $0x10] sm:$0xf]
    %v832 = vld [vmem:[#allocation11 + $0x14] sm:$0xf]
    %v833 = vld [vmem:[#allocation11 + $0x18] sm:$0xf]
    %v834 = vld [vmem:[#allocation11 + $0x1c] sm:$0xf]
    %v835 = vld [vmem:[#allocation11 + $0x20] sm:$0xf]
    %v836 = vld [vmem:[#allocation11 + $0x24] sm:$0xf]
    %v837 = vld [vmem:[#allocation11 + $0x28] sm:$0xf]
    %v838 = vld [vmem:[#allocation11 + $0x2c] sm:$0xf]
    %v839 = vld [vmem:[#allocation11 + $0x30] sm:$0xf]
    %v840 = vld [vmem:[#allocation11 + $0x34] sm:$0xf]
    %v841 = vld [vmem:[#allocation11 + $0x38] sm:$0xf]
    %v842 = vld [vmem:[#allocation11 + $0x3c] sm:$0xf]
    %v843 = vld [vmem:[%s7] sm:$0x1]
    %v845 = vlaneseq
    %v846 = vshrl.u32 %v845, 7
    %v847 = vsub.s32 0, %v846
    %v848 = vrot.slane %v843, %v847
    %v866 = vunpack.c.l.b16 %v827
    %v867 = vunpack.c.l.b16 %v828
    %v868 = vunpack.c.l.b16 %v829
    %v869 = vunpack.c.l.b16 %v830
    %v870 = vunpack.c.l.b16 %v831
    %v871 = vunpack.c.l.b16 %v832
    %v872 = vunpack.c.l.b16 %v833
    %v873 = vunpack.c.l.b16 %v834
    %v874 = vunpack.c.l.b16 %v835
    %v875 = vunpack.c.l.b16 %v836
    %v876 = vunpack.c.l.b16 %v837
    %v877 = vunpack.c.l.b16 %v838
    %v878 = vunpack.c.l.b16 %v839
    %v879 = vunpack.c.l.b16 %v840
    %v880 = vunpack.c.l.b16 %v841
    %v881 = vunpack.c.l.b16 %v842
    %v882 = vpack.c.b16 %v867, %v866
    %v883 = vpack.c.b16 %v869, %v868
    %v884 = vpack.c.b16 %v871, %v870
    %v885 = vpack.c.b16 %v873, %v872
    %v886 = vpack.c.b16 %v875, %v874
    %v887 = vpack.c.b16 %v877, %v876
    %v888 = vpack.c.b16 %v879, %v878
    %v889 = vpack.c.b16 %v881, %v880
    %898 = vmatprep.subr.bf16.mxu0 0
    %899 = vmatpush1.bf16.msra.mxu0 %v882
    %900 = vmatprep.subr.bf16.mxu0 0
    %901 = vmatpush1.bf16.msra.mxu0 %v883
    %902 = vmatprep.subr.bf16.mxu0 0
    %903 = vmatpush1.bf16.msra.mxu0 %v884
    %904 = vmatprep.subr.bf16.mxu0 0
    %905 = vmatpush1.bf16.msra.mxu0 %v885
    %906 = vmatprep.subr.bf16.mxu0 0
    %907 = vmatpush1.bf16.msra.mxu0 %v886
    %908 = vmatprep.subr.bf16.mxu0 0
    %909 = vmatpush1.bf16.msra.mxu0 %v887
    %910 = vmatprep.subr.bf16.mxu0 0
    %911 = vmatpush1.bf16.msra.mxu0 %v888
    %912 = vmatprep.subr.bf16.mxu0 0
    %913 = vmatpush1.bf16.msra.mxu0 %v889
    %914 = vmatprep.subr.bf16.mxu0 0
    %915 = vmatpush1.bf16.msra.mxu0 0
    %916 = vmatprep.subr.bf16.mxu0 0
    %917 = vmatpush1.bf16.msra.mxu0 0
    %918 = vmatprep.subr.bf16.mxu0 0
    %919 = vmatpush1.bf16.msra.mxu0 0
    %920 = vmatprep.subr.bf16.mxu0 0
    %921 = vmatpush1.bf16.msra.mxu0 0
    %922 = vmatprep.subr.bf16.mxu0 0
    %923 = vmatpush1.bf16.msra.mxu0 0
    %924 = vmatprep.subr.bf16.mxu0 0
    %925 = vmatpush1.bf16.msra.mxu0 0
    %926 = vmatprep.subr.bf16.mxu0 0
    %927 = vmatpush1.bf16.msra.mxu0 0
    %928 = vmatprep.subr.bf16.mxu0 0
    %929 = vmatpush1.bf16.msra.mxu0 0
    %930 = vmatprep.mubr.bf16.mxu0 0
    %931 = vmatmul.mubr.bf16.gmra.mrb[0].mxu0 %v826
    %v932 = vpop.f32.mrb[0].mxu0
    %v933 = vadd.f32 %v848, %v932
    %v934 = vpop.f32.mrb[0].mxu0
    %v935 = vpop.f32.mrb[0].mxu0
    %v936 = vpop.f32.mrb[0].mxu0
    %937 = vdwg.mxu0
    %938 = vst [vmem:[#allocation13] sm:$0xff] %v933
    // Predicated region
    $region46: #{tpu_custom_call.1} parent=1 // pred_check
      _
    $region47: #{tpu_custom_call.1} parent=1 // pred_check_branch
      %940 = sbr.rel (0) target = $region49
    $region48: #{tpu_custom_call.1} parent=1 // pred_region
      %s942 = ssub.s32 128, 128
      %943 = vsyncadd [#allocation7], %s942
      %s945 = sshll.u32 [#allocation13], 4
      %s946 = int_to_ptr.vmem [resolvable:$true] %s945
      %948 = dma.vmem_to_hbm [thread:$0]  %s946, 128, %s8, [#allocation7]
    $region49: #{tpu_custom_call.1} parent=1 // pred_fallthru
      _
    // Predicated region
    $region50: #{tpu_custom_call.1} parent=1 // pred_check
      _
    $region51: #{tpu_custom_call.1} parent=1 // pred_check_branch
      %950 = sbr.rel (0) target = $region53
    $region52: #{tpu_custom_call.1} parent=1 // pred_region
      %951 = dma.done [#allocation7], 128
    $region53: #{tpu_custom_call.1} parent=1 // pred_fallthru
      _
    %952 = vsyncpa [#allocation6], 1
    %953 = vsyncpa [#allocation9], 1
    %954 = vsyncpa [#allocation12], 1
    %955 = vsyncpa [#allocation7], 1

</llo_original>
